<compile_context>
chip_gen: v5e
topology: v5e:2x2
jax: 0.10.0
libtpu: 0.0.40
codegen_flags: <defaults>
</compile_context>

<pallas_src>
import jax
import jax.numpy as jnp
from jax.experimental import pallas as pl
from jax.experimental.pallas import tpu as pltpu
import numpy as np


def _round_up(x: int, m: int) -> int:
    return ((x + m - 1) // m) * m


def make_refine_actor_kernel(max_action: float, refine_times: int):
    """Returns a Pallas kernel closure with static max_action / refine_times."""

    def kernel(state_ref, action_ref,
               w1s_ref, w1a_ref, b1_ref,
               w2_ref, b2_ref,
               w3_ref, b3_ref,
               out_ref,
               spre_ref, act_ref):
        # Loop-invariant first-layer state term, computed once per batch tile:
        #   s_pre = state @ W1_s + b1   (bf16 x bf16 -> f32 accumulate)
        spre_ref[...] = (
            jnp.dot(state_ref[...], w1s_ref[...],
                    preferred_element_type=jnp.float32)
            + b1_ref[...]
        )

        # Loop-carried action lives in VMEM scratch (bounded vreg pressure
        # across the unrolled refine iterations, even at tb=512).
        act_ref[...] = action_ref[...].astype(jnp.float32)

        # refine_times is static & small -> fully unroll; the VMEM-staged act
        # bounds live ranges between iterations.
        for _ in range(refine_times):
            act_bf16 = act_ref[...].astype(jnp.bfloat16)
            # l1(cat(state, act)) = s_pre + act @ W1_a
            h = jnp.maximum(
                spre_ref[...]
                + jnp.dot(act_bf16, w1a_ref[...],
                          preferred_element_type=jnp.float32),
                0.0)
            h = jnp.maximum(
                jnp.dot(h.astype(jnp.bfloat16), w2_ref[...],
                        preferred_element_type=jnp.float32)
                + b2_ref[...],
                0.0)
            d = (jnp.dot(h.astype(jnp.bfloat16), w3_ref[...],
                         preferred_element_type=jnp.float32)
                 + b3_ref[...])
            # Residual update in f32 (VPU/EUP math stays f32 -> fine on v5e).
            act_ref[...] = act_ref[...] + max_action * jnp.tanh(d)

        out_ref[...] = act_ref[...].astype(out_ref.dtype)

    return kernel


def _pick_batch_tile(B: int, block_b: int) -> int:
    """Batch tile: big enough to amortize grid-step overhead, but guaranteeing
    >= 2 grid steps for mid-sized batches so both v7x TensorCores get work."""
    if B <= 8:
        return 8
    if B <= 2 * block_b:
        return min(block_b, _round_up((B + 1) // 2, 8))
    return block_b


def _vmem_limit_bytes(tb, s_pad, a_pad, hidden) -> int:
    f32, bf16 = 4, 2
    io_tiles = tb * (s_pad * bf16 + a_pad * f32 + a_pad * f32) * 2  # 2x: dbl buf
    weights = (s_pad * hidden + a_pad * hidden
               + hidden * hidden + hidden * a_pad) * bf16 * 2
    biases = (2 * hidden + a_pad) * f32 * 2
    scratch = tb * (hidden + a_pad) * f32
    est = io_tiles + weights + biases + scratch
    return min(max(2 * est, 8 << 20), 48 << 20)


def refine_actor_forward(state, action, params, *, max_action, refine_times,
                         block_b: int = 512):
    """state: (B, state_dim), action: (B, action_dim) -> refined action."""
    w1s, w1a, b1, w2, b2, w3, b3 = params
    B, action_dim = action.shape
    state_dim = state.shape[1]
    hidden = w2.shape[0]

    # --- Lane-dense padding: state and action dims padded to multiples of 128.
    # Zero-padded activation columns x zero weight rows are exact; zero W3
    # columns / b3 columns keep the padded action lanes at 0 through tanh.
    s_pad = _round_up(max(state_dim, 128), 128)
    a_pad = _round_up(max(action_dim, 128), 128)
    ps = s_pad - state_dim
    pa = a_pad - action_dim

    state_p = jnp.pad(state.astype(jnp.float32), ((0, 0), (0, ps)))
    state_p = state_p.astype(jnp.bfloat16)               # dot operand only
    action_p = jnp.pad(action.astype(jnp.float32), ((0, 0), (0, pa)))

    # Weights as bf16 (MXU-native); biases stay f32 (added post-accumulation).
    w1s_p = jnp.pad(w1s, ((0, ps), (0, 0))).astype(jnp.bfloat16)
    w1a_p = jnp.pad(w1a, ((0, pa), (0, 0))).astype(jnp.bfloat16)
    w2_b = w2.astype(jnp.bfloat16)
    w3_p = jnp.pad(w3, ((0, 0), (0, pa))).astype(jnp.bfloat16)
    b1_f = b1.astype(jnp.float32)
    b2_f = b2.astype(jnp.float32)
    b3_p = jnp.pad(b3, ((0, 0), (0, pa))).astype(jnp.float32)

    # --- Batch tiling (>=2 grid steps for mid-sized B -> both TCs on v7x). ---
    tb = _pick_batch_tile(B, block_b)
    b_pad = _round_up(B, tb)
    state_p = jnp.pad(state_p, ((0, b_pad - B), (0, 0)))
    action_p = jnp.pad(action_p, ((0, b_pad - B), (0, 0)))
    grid = (pl.cdiv(b_pad, tb),)

    kernel = make_refine_actor_kernel(float(max_action), int(refine_times))

    batch_map = lambda i: (i, 0)     # tiled over batch
    const_map = lambda i: (0, 0)     # weights: resident, no re-DMA per step

    out = pl.pallas_call(
        kernel,
        out_shape=jax.ShapeDtypeStruct((b_pad, a_pad), jnp.float32),
        grid=grid,
        in_specs=[
            pl.BlockSpec((tb, s_pad), batch_map),          # state (bf16)
            pl.BlockSpec((tb, a_pad), batch_map),          # action (f32)
            pl.BlockSpec((s_pad, hidden), const_map),      # W1_s (bf16)
            pl.BlockSpec((a_pad, hidden), const_map),      # W1_a (bf16)
            pl.BlockSpec((1, hidden), const_map),          # b1   (f32)
            pl.BlockSpec((hidden, hidden), const_map),     # W2   (bf16)
            pl.BlockSpec((1, hidden), const_map),          # b2   (f32)
            pl.BlockSpec((hidden, a_pad), const_map),      # W3   (bf16)
            pl.BlockSpec((1, a_pad), const_map),           # b3   (f32)
        ],
        out_specs=pl.BlockSpec((tb, a_pad), batch_map),
        scratch_shapes=[
            pltpu.VMEM((tb, hidden), jnp.float32),         # s_pre
            pltpu.VMEM((tb, a_pad), jnp.float32),          # loop-carried act
        ],
        compiler_params=pltpu.CompilerParams(
            dimension_semantics=("parallel",),
            vmem_limit_bytes=_vmem_limit_bytes(tb, s_pad, a_pad, hidden)),
    )(state_p, action_p, w1s_p, w1a_p, b1_f, w2_b, b2_f, w3_p, b3_p)

    return out[:B, :action_dim]


def init_params(key, state_dim, action_dim, hidden=256):
    """nn.Linear-style init (U[-1/sqrt(fan_in), 1/sqrt(fan_in)]).

    Weights stored transposed: (in_features, out_features); biases (1, out).
    """
    dim_in = state_dim + action_dim
    k = jax.random.split(key, 6)

    def u(kk, shape, fan_in):
        bound = 1.0 / np.sqrt(fan_in)
        return jax.random.uniform(kk, shape, jnp.float32, -bound, bound)

    w1_full = u(k[0], (dim_in, hidden), dim_in)
    w1s = w1_full[:state_dim, :]
    w1a = w1_full[state_dim:, :]
    b1 = u(k[1], (1, hidden), dim_in)
    w2 = u(k[2], (hidden, hidden), hidden)
    b2 = u(k[3], (1, hidden), hidden)
    w3 = u(k[4], (hidden, action_dim), hidden)
    b3 = u(k[5], (1, action_dim), hidden)
    return (w1s, w1a, b1, w2, b2, w3, b3)


def refine_actor_reference(state, action, params, *, max_action, refine_times,
                           bf16_matmuls=False):
    """Pure-JAX reference matching the PyTorch forward.

    With bf16_matmuls=True it mirrors the kernel's mixed precision (bf16 MXU
    operands, f32 accumulation, f32 elementwise), for a tight comparison.
    """
    w1s, w1a, b1, w2, b2, w3, b3 = params

    if bf16_matmuls:
        cast = lambda x: x.astype(jnp.bfloat16)
    else:
        cast = lambda x: x

    def dot(a, b):
        return jnp.dot(cast(a), cast(b), preferred_element_type=jnp.float32)

    act = action.astype(jnp.float32)
    s_pre = dot(state, w1s) + b1
    for _ in range(refine_times):
        h = jnp.maximum(s_pre + dot(act, w1a), 0.0)
        h = jnp.maximum(dot(h, w2) + b2, 0.0)
        act = act + max_action * jnp.tanh(dot(h, w3) + b3)
    return act


if __name__ == "__main__":
    state_dim = 16
    action_dim = 4
    batch = 8
    max_action = 1.0
    refine_times = 3

    key = jax.random.PRNGKey(0)
    k_params, k_state, k_action = jax.random.split(key, 3)

    params = init_params(k_params, state_dim, action_dim)
    state = jax.random.normal(k_state, (batch, state_dim), jnp.float32)
    action = jax.random.uniform(k_action, (batch, action_dim), jnp.float32,
                                -max_action, max_action)

    out = refine_actor_forward(state, action, params,
                               max_action=max_action, refine_times=refine_times)
    out = jax.block_until_ready(out)

    # Tight check vs a reference that mirrors the kernel's mixed precision.
    ref_mixed = refine_actor_reference(state, action, params,
                                       max_action=max_action,
                                       refine_times=refine_times,
                                       bf16_matmuls=True)
    np.testing.assert_allclose(np.asarray(out), np.asarray(ref_mixed),
                               rtol=2e-3, atol=2e-3)

    # Loose sanity check vs the full-f32 reference (bf16 weights => ~1e-2 err).
    ref_f32 = refine_actor_reference(state, action, params,
                                     max_action=max_action,
                                     refine_times=refine_times,
                                     bf16_matmuls=False)
    np.testing.assert_allclose(np.asarray(out), np.asarray(ref_f32),
                               rtol=1e-1, atol=1e-1)

    print("KERNEL_OK")
</pallas_src>

<mosaic_0001>
module attributes {stable_mosaic.version = 11 : i64} {
  func.func @kernel(%arg0: i32, %arg1: memref<8x128xbf16, #tpu.memory_space<vmem>>, %arg2: memref<8x128xf32, #tpu.memory_space<vmem>>, %arg3: memref<128x256xbf16, #tpu.memory_space<vmem>>, %arg4: memref<128x256xbf16, #tpu.memory_space<vmem>>, %arg5: memref<1x256xf32, #tpu.memory_space<vmem>>, %arg6: memref<256x256xbf16, #tpu.memory_space<vmem>>, %arg7: memref<1x256xf32, #tpu.memory_space<vmem>>, %arg8: memref<256x128xbf16, #tpu.memory_space<vmem>>, %arg9: memref<1x128xf32, #tpu.memory_space<vmem>>, %arg10: memref<8x128xf32, #tpu.memory_space<vmem>>, %arg11: memref<8x256xf32, #tpu.memory_space<vmem>>, %arg12: memref<8x128xf32, #tpu.memory_space<vmem>>) attributes {dimension_semantics = [#tpu.dimension_semantics<parallel>], iteration_bounds = array<i64: 1>, scalar_prefetch = 0 : i64, scratch_operands = 2 : i64, tpu.core_type = #tpu.core_type<tc>, window_params = [{transform_indices = @transform_0, window_bounds = array<i64: 8, 128>}, {transform_indices = @transform_1, window_bounds = array<i64: 8, 128>}, {pipeline_mode = #tpu.pipeline_mode<synchronous>, transform_indices = @transform_2, window_bounds = array<i64: 128, 256>}, {pipeline_mode = #tpu.pipeline_mode<synchronous>, transform_indices = @transform_3, window_bounds = array<i64: 128, 256>}, {pipeline_mode = #tpu.pipeline_mode<synchronous>, transform_indices = @transform_4, window_bounds = array<i64: 1, 256>}, {pipeline_mode = #tpu.pipeline_mode<synchronous>, transform_indices = @transform_5, window_bounds = array<i64: 256, 256>}, {pipeline_mode = #tpu.pipeline_mode<synchronous>, transform_indices = @transform_6, window_bounds = array<i64: 1, 256>}, {pipeline_mode = #tpu.pipeline_mode<synchronous>, transform_indices = @transform_7, window_bounds = array<i64: 256, 128>}, {pipeline_mode = #tpu.pipeline_mode<synchronous>, transform_indices = @transform_8, window_bounds = array<i64: 1, 128>}, {transform_indices = @transform_9, window_bounds = array<i64: 8, 128>}]} {
    %c0 = arith.constant 0 : index
    %c0_0 = arith.constant 0 : index
    %0 = vector.load %arg1[%c0, %c0_0] : memref<8x128xbf16, #tpu.memory_space<vmem>>, vector<8x128xbf16>
    %c0_1 = arith.constant 0 : index
    %c0_2 = arith.constant 0 : index
    %1 = vector.load %arg3[%c0_1, %c0_2] : memref<128x256xbf16, #tpu.memory_space<vmem>>, vector<128x256xbf16>
    %cst = arith.constant dense<0.000000e+00> : vector<8x256xf32>
    %2 = tpu.matmul %0, %1, %cst {dimension_numbers = #tpu.dot_dimension_numbers<[1], [0], [0], [1], [0, 0, 1, 1], [], []>} : vector<8x128xbf16>, vector<128x256xbf16>, vector<8x256xf32> -> vector<8x256xf32>
    %c0_3 = arith.constant 0 : index
    %c0_4 = arith.constant 0 : index
    %3 = vector.load %arg5[%c0_3, %c0_4] : memref<1x256xf32, #tpu.memory_space<vmem>>, vector<1x256xf32>
    %4 = vector.broadcast %3 : vector<1x256xf32> to vector<8x256xf32>
    %5 = arith.addf %2, %4 : vector<8x256xf32>
    %c0_5 = arith.constant 0 : index
    %c0_6 = arith.constant 0 : index
    %6 = vector.load %arg11[%c0_5, %c0_6] : memref<8x256xf32, #tpu.memory_space<vmem>>, vector<8x256xf32>
    tpu.vector_store %arg11[%c0_5, %c0_6], %5 {strides = array<i32>} : memref<8x256xf32, #tpu.memory_space<vmem>>, vector<8x256xf32>,
    %c0_7 = arith.constant 0 : index
    %c0_8 = arith.constant 0 : index
    %7 = vector.load %arg2[%c0_7, %c0_8] : memref<8x128xf32, #tpu.memory_space<vmem>>, vector<8x128xf32>
    %c0_9 = arith.constant 0 : index
    %c0_10 = arith.constant 0 : index
    %8 = vector.load %arg12[%c0_9, %c0_10] : memref<8x128xf32, #tpu.memory_space<vmem>>, vector<8x128xf32>
    tpu.vector_store %arg12[%c0_9, %c0_10], %7 {strides = array<i32>} : memref<8x128xf32, #tpu.memory_space<vmem>>, vector<8x128xf32>,
    %c0_11 = arith.constant 0 : index
    %c0_12 = arith.constant 0 : index
    %9 = vector.load %arg12[%c0_11, %c0_12] : memref<8x128xf32, #tpu.memory_space<vmem>>, vector<8x128xf32>
    %10 = arith.truncf %9 : vector<8x128xf32> to vector<8x128xbf16>
    %c0_13 = arith.constant 0 : index
    %c0_14 = arith.constant 0 : index
    %11 = vector.load %arg11[%c0_13, %c0_14] : memref<8x256xf32, #tpu.memory_space<vmem>>, vector<8x256xf32>
    %c0_15 = arith.constant 0 : index
    %c0_16 = arith.constant 0 : index
    %12 = vector.load %arg4[%c0_15, %c0_16] : memref<128x256xbf16, #tpu.memory_space<vmem>>, vector<128x256xbf16>
    %cst_17 = arith.constant dense<0.000000e+00> : vector<8x256xf32>
    %13 = tpu.matmul %10, %12, %cst_17 {dimension_numbers = #tpu.dot_dimension_numbers<[1], [0], [0], [1], [0, 0, 1, 1], [], []>} : vector<8x128xbf16>, vector<128x256xbf16>, vector<8x256xf32> -> vector<8x256xf32>
    %14 = arith.addf %11, %13 : vector<8x256xf32>
    %cst_18 = arith.constant 0.000000e+00 : f32
    %15 = vector.broadcast %cst_18 : f32 to vector<8x256xf32>
    %16 = arith.maximumf %14, %15 : vector<8x256xf32>
    %17 = arith.truncf %16 : vector<8x256xf32> to vector<8x256xbf16>
    %c0_19 = arith.constant 0 : index
    %c0_20 = arith.constant 0 : index
    %18 = vector.load %arg6[%c0_19, %c0_20] : memref<256x256xbf16, #tpu.memory_space<vmem>>, vector<256x256xbf16>
    %cst_21 = arith.constant dense<0.000000e+00> : vector<8x256xf32>
    %19 = tpu.matmul %17, %18, %cst_21 {dimension_numbers = #tpu.dot_dimension_numbers<[1], [0], [0], [1], [0, 0, 1, 1], [], []>} : vector<8x256xbf16>, vector<256x256xbf16>, vector<8x256xf32> -> vector<8x256xf32>
    %c0_22 = arith.constant 0 : index
    %c0_23 = arith.constant 0 : index
    %20 = vector.load %arg7[%c0_22, %c0_23] : memref<1x256xf32, #tpu.memory_space<vmem>>, vector<1x256xf32>
    %21 = vector.broadcast %20 : vector<1x256xf32> to vector<8x256xf32>
    %22 = arith.addf %19, %21 : vector<8x256xf32>
    %cst_24 = arith.constant 0.000000e+00 : f32
    %23 = vector.broadcast %cst_24 : f32 to vector<8x256xf32>
    %24 = arith.maximumf %22, %23 : vector<8x256xf32>
    %25 = arith.truncf %24 : vector<8x256xf32> to vector<8x256xbf16>
    %c0_25 = arith.constant 0 : index
    %c0_26 = arith.constant 0 : index
    %26 = vector.load %arg8[%c0_25, %c0_26] : memref<256x128xbf16, #tpu.memory_space<vmem>>, vector<256x128xbf16>
    %cst_27 = arith.constant dense<0.000000e+00> : vector<8x128xf32>
    %27 = tpu.matmul %25, %26, %cst_27 {dimension_numbers = #tpu.dot_dimension_numbers<[1], [0], [0], [1], [0, 0, 1, 1], [], []>} : vector<8x256xbf16>, vector<256x128xbf16>, vector<8x128xf32> -> vector<8x128xf32>
    %c0_28 = arith.constant 0 : index
    %c0_29 = arith.constant 0 : index
    %28 = vector.load %arg9[%c0_28, %c0_29] : memref<1x128xf32, #tpu.memory_space<vmem>>, vector<1x128xf32>
    %29 = vector.broadcast %28 : vector<1x128xf32> to vector<8x128xf32>
    %30 = arith.addf %27, %29 : vector<8x128xf32>
    %c0_30 = arith.constant 0 : index
    %c0_31 = arith.constant 0 : index
    %31 = vector.load %arg12[%c0_30, %c0_31] : memref<8x128xf32, #tpu.memory_space<vmem>>, vector<8x128xf32>
    %32 = math.tanh %30 : vector<8x128xf32>
    %cst_32 = arith.constant 1.000000e+00 : f32
    %33 = vector.broadcast %cst_32 : f32 to vector<8x128xf32>
    %34 = arith.mulf %33, %32 : vector<8x128xf32>
    %35 = arith.addf %31, %34 : vector<8x128xf32>
    %c0_33 = arith.constant 0 : index
    %c0_34 = arith.constant 0 : index
    %36 = vector.load %arg12[%c0_33, %c0_34] : memref<8x128xf32, #tpu.memory_space<vmem>>, vector<8x128xf32>
    tpu.vector_store %arg12[%c0_33, %c0_34], %35 {strides = array<i32>} : memref<8x128xf32, #tpu.memory_space<vmem>>, vector<8x128xf32>,
    %c0_35 = arith.constant 0 : index
    %c0_36 = arith.constant 0 : index
    %37 = vector.load %arg12[%c0_35, %c0_36] : memref<8x128xf32, #tpu.memory_space<vmem>>, vector<8x128xf32>
    %38 = arith.truncf %37 : vector<8x128xf32> to vector<8x128xbf16>
    %c0_37 = arith.constant 0 : index
    %c0_38 = arith.constant 0 : index
    %39 = vector.load %arg11[%c0_37, %c0_38] : memref<8x256xf32, #tpu.memory_space<vmem>>, vector<8x256xf32>
    %c0_39 = arith.constant 0 : index
    %c0_40 = arith.constant 0 : index
    %40 = vector.load %arg4[%c0_39, %c0_40] : memref<128x256xbf16, #tpu.memory_space<vmem>>, vector<128x256xbf16>
    %cst_41 = arith.constant dense<0.000000e+00> : vector<8x256xf32>
    %41 = tpu.matmul %38, %40, %cst_41 {dimension_numbers = #tpu.dot_dimension_numbers<[1], [0], [0], [1], [0, 0, 1, 1], [], []>} : vector<8x128xbf16>, vector<128x256xbf16>, vector<8x256xf32> -> vector<8x256xf32>
    %42 = arith.addf %39, %41 : vector<8x256xf32>
    %cst_42 = arith.constant 0.000000e+00 : f32
    %43 = vector.broadcast %cst_42 : f32 to vector<8x256xf32>
    %44 = arith.maximumf %42, %43 : vector<8x256xf32>
    %45 = arith.truncf %44 : vector<8x256xf32> to vector<8x256xbf16>
    %c0_43 = arith.constant 0 : index
    %c0_44 = arith.constant 0 : index
    %46 = vector.load %arg6[%c0_43, %c0_44] : memref<256x256xbf16, #tpu.memory_space<vmem>>, vector<256x256xbf16>
    %cst_45 = arith.constant dense<0.000000e+00> : vector<8x256xf32>
    %47 = tpu.matmul %45, %46, %cst_45 {dimension_numbers = #tpu.dot_dimension_numbers<[1], [0], [0], [1], [0, 0, 1, 1], [], []>} : vector<8x256xbf16>, vector<256x256xbf16>, vector<8x256xf32> -> vector<8x256xf32>
    %c0_46 = arith.constant 0 : index
    %c0_47 = arith.constant 0 : index
    %48 = vector.load %arg7[%c0_46, %c0_47] : memref<1x256xf32, #tpu.memory_space<vmem>>, vector<1x256xf32>
    %49 = vector.broadcast %48 : vector<1x256xf32> to vector<8x256xf32>
    %50 = arith.addf %47, %49 : vector<8x256xf32>
    %cst_48 = arith.constant 0.000000e+00 : f32
    %51 = vector.broadcast %cst_48 : f32 to vector<8x256xf32>
    %52 = arith.maximumf %50, %51 : vector<8x256xf32>
    %53 = arith.truncf %52 : vector<8x256xf32> to vector<8x256xbf16>
    %c0_49 = arith.constant 0 : index
    %c0_50 = arith.constant 0 : index
    %54 = vector.load %arg8[%c0_49, %c0_50] : memref<256x128xbf16, #tpu.memory_space<vmem>>, vector<256x128xbf16>
    %cst_51 = arith.constant dense<0.000000e+00> : vector<8x128xf32>
    %55 = tpu.matmul %53, %54, %cst_51 {dimension_numbers = #tpu.dot_dimension_numbers<[1], [0], [0], [1], [0, 0, 1, 1], [], []>} : vector<8x256xbf16>, vector<256x128xbf16>, vector<8x128xf32> -> vector<8x128xf32>
    %c0_52 = arith.constant 0 : index
    %c0_53 = arith.constant 0 : index
    %56 = vector.load %arg9[%c0_52, %c0_53] : memref<1x128xf32, #tpu.memory_space<vmem>>, vector<1x128xf32>
    %57 = vector.broadcast %56 : vector<1x128xf32> to vector<8x128xf32>
    %58 = arith.addf %55, %57 : vector<8x128xf32>
    %c0_54 = arith.constant 0 : index
    %c0_55 = arith.constant 0 : index
    %59 = vector.load %arg12[%c0_54, %c0_55] : memref<8x128xf32, #tpu.memory_space<vmem>>, vector<8x128xf32>
    %60 = math.tanh %58 : vector<8x128xf32>
    %cst_56 = arith.constant 1.000000e+00 : f32
    %61 = vector.broadcast %cst_56 : f32 to vector<8x128xf32>
    %62 = arith.mulf %61, %60 : vector<8x128xf32>
    %63 = arith.addf %59, %62 : vector<8x128xf32>
    %c0_57 = arith.constant 0 : index
    %c0_58 = arith.constant 0 : index
    %64 = vector.load %arg12[%c0_57, %c0_58] : memref<8x128xf32, #tpu.memory_space<vmem>>, vector<8x128xf32>
    tpu.vector_store %arg12[%c0_57, %c0_58], %63 {strides = array<i32>} : memref<8x128xf32, #tpu.memory_space<vmem>>, vector<8x128xf32>,
    %c0_59 = arith.constant 0 : index
    %c0_60 = arith.constant 0 : index
    %65 = vector.load %arg12[%c0_59, %c0_60] : memref<8x128xf32, #tpu.memory_space<vmem>>, vector<8x128xf32>
    %66 = arith.truncf %65 : vector<8x128xf32> to vector<8x128xbf16>
    %c0_61 = arith.constant 0 : index
    %c0_62 = arith.constant 0 : index
    %67 = vector.load %arg11[%c0_61, %c0_62] : memref<8x256xf32, #tpu.memory_space<vmem>>, vector<8x256xf32>
    %c0_63 = arith.constant 0 : index
    %c0_64 = arith.constant 0 : index
    %68 = vector.load %arg4[%c0_63, %c0_64] : memref<128x256xbf16, #tpu.memory_space<vmem>>, vector<128x256xbf16>
    %cst_65 = arith.constant dense<0.000000e+00> : vector<8x256xf32>
    %69 = tpu.matmul %66, %68, %cst_65 {dimension_numbers = #tpu.dot_dimension_numbers<[1], [0], [0], [1], [0, 0, 1, 1], [], []>} : vector<8x128xbf16>, vector<128x256xbf16>, vector<8x256xf32> -> vector<8x256xf32>
    %70 = arith.addf %67, %69 : vector<8x256xf32>
    %cst_66 = arith.constant 0.000000e+00 : f32
    %71 = vector.broadcast %cst_66 : f32 to vector<8x256xf32>
    %72 = arith.maximumf %70, %71 : vector<8x256xf32>
    %73 = arith.truncf %72 : vector<8x256xf32> to vector<8x256xbf16>
    %c0_67 = arith.constant 0 : index
    %c0_68 = arith.constant 0 : index
    %74 = vector.load %arg6[%c0_67, %c0_68] : memref<256x256xbf16, #tpu.memory_space<vmem>>, vector<256x256xbf16>
    %cst_69 = arith.constant dense<0.000000e+00> : vector<8x256xf32>
    %75 = tpu.matmul %73, %74, %cst_69 {dimension_numbers = #tpu.dot_dimension_numbers<[1], [0], [0], [1], [0, 0, 1, 1], [], []>} : vector<8x256xbf16>, vector<256x256xbf16>, vector<8x256xf32> -> vector<8x256xf32>
    %c0_70 = arith.constant 0 : index
    %c0_71 = arith.constant 0 : index
    %76 = vector.load %arg7[%c0_70, %c0_71] : memref<1x256xf32, #tpu.memory_space<vmem>>, vector<1x256xf32>
    %77 = vector.broadcast %76 : vector<1x256xf32> to vector<8x256xf32>
    %78 = arith.addf %75, %77 : vector<8x256xf32>
    %cst_72 = arith.constant 0.000000e+00 : f32
    %79 = vector.broadcast %cst_72 : f32 to vector<8x256xf32>
    %80 = arith.maximumf %78, %79 : vector<8x256xf32>
    %81 = arith.truncf %80 : vector<8x256xf32> to vector<8x256xbf16>
    %c0_73 = arith.constant 0 : index
    %c0_74 = arith.constant 0 : index
    %82 = vector.load %arg8[%c0_73, %c0_74] : memref<256x128xbf16, #tpu.memory_space<vmem>>, vector<256x128xbf16>
    %cst_75 = arith.constant dense<0.000000e+00> : vector<8x128xf32>
    %83 = tpu.matmul %81, %82, %cst_75 {dimension_numbers = #tpu.dot_dimension_numbers<[1], [0], [0], [1], [0, 0, 1, 1], [], []>} : vector<8x256xbf16>, vector<256x128xbf16>, vector<8x128xf32> -> vector<8x128xf32>
    %c0_76 = arith.constant 0 : index
    %c0_77 = arith.constant 0 : index
    %84 = vector.load %arg9[%c0_76, %c0_77] : memref<1x128xf32, #tpu.memory_space<vmem>>, vector<1x128xf32>
    %85 = vector.broadcast %84 : vector<1x128xf32> to vector<8x128xf32>
    %86 = arith.addf %83, %85 : vector<8x128xf32>
    %c0_78 = arith.constant 0 : index
    %c0_79 = arith.constant 0 : index
    %87 = vector.load %arg12[%c0_78, %c0_79] : memref<8x128xf32, #tpu.memory_space<vmem>>, vector<8x128xf32>
    %88 = math.tanh %86 : vector<8x128xf32>
    %cst_80 = arith.constant 1.000000e+00 : f32
    %89 = vector.broadcast %cst_80 : f32 to vector<8x128xf32>
    %90 = arith.mulf %89, %88 : vector<8x128xf32>
    %91 = arith.addf %87, %90 : vector<8x128xf32>
    %c0_81 = arith.constant 0 : index
    %c0_82 = arith.constant 0 : index
    %92 = vector.load %arg12[%c0_81, %c0_82] : memref<8x128xf32, #tpu.memory_space<vmem>>, vector<8x128xf32>
    tpu.vector_store %arg12[%c0_81, %c0_82], %91 {strides = array<i32>} : memref<8x128xf32, #tpu.memory_space<vmem>>, vector<8x128xf32>,
    %c0_83 = arith.constant 0 : index
    %c0_84 = arith.constant 0 : index
    %93 = vector.load %arg12[%c0_83, %c0_84] : memref<8x128xf32, #tpu.memory_space<vmem>>, vector<8x128xf32>
    %c0_85 = arith.constant 0 : index
    %c0_86 = arith.constant 0 : index
    %94 = vector.load %arg10[%c0_85, %c0_86] : memref<8x128xf32, #tpu.memory_space<vmem>>, vector<8x128xf32>
    tpu.vector_store %arg10[%c0_85, %c0_86], %93 {strides = array<i32>} : memref<8x128xf32, #tpu.memory_space<vmem>>, vector<8x128xf32>,
    return
  }
  func.func @transform_0(%arg0: i32) -> (i32, i32) {
    %c0_i32 = arith.constant 0 : i32
    %c0_i32_0 = arith.constant 0 : i32
    return %arg0, %c0_i32 : i32, i32
  }
  func.func @transform_1(%arg0: i32) -> (i32, i32) {
    %c0_i32 = arith.constant 0 : i32
    %c0_i32_0 = arith.constant 0 : i32
    return %arg0, %c0_i32 : i32, i32
  }
  func.func @transform_2(%arg0: i32) -> (i32, i32) {
    %c0_i32 = arith.constant 0 : i32
    %c0_i32_0 = arith.constant 0 : i32
    %c0_i32_1 = arith.constant 0 : i32
    return %c0_i32, %c0_i32_0 : i32, i32
  }
  func.func @transform_3(%arg0: i32) -> (i32, i32) {
    %c0_i32 = arith.constant 0 : i32
    %c0_i32_0 = arith.constant 0 : i32
    %c0_i32_1 = arith.constant 0 : i32
    return %c0_i32, %c0_i32_0 : i32, i32
  }
  func.func @transform_4(%arg0: i32) -> (i32, i32) {
    %c0_i32 = arith.constant 0 : i32
    %c0_i32_0 = arith.constant 0 : i32
    %c0_i32_1 = arith.constant 0 : i32
    return %c0_i32, %c0_i32_0 : i32, i32
  }
  func.func @transform_5(%arg0: i32) -> (i32, i32) {
    %c0_i32 = arith.constant 0 : i32
    %c0_i32_0 = arith.constant 0 : i32
    %c0_i32_1 = arith.constant 0 : i32
    return %c0_i32, %c0_i32_0 : i32, i32
  }
  func.func @transform_6(%arg0: i32) -> (i32, i32) {
    %c0_i32 = arith.constant 0 : i32
    %c0_i32_0 = arith.constant 0 : i32
    %c0_i32_1 = arith.constant 0 : i32
    return %c0_i32, %c0_i32_0 : i32, i32
  }
  func.func @transform_7(%arg0: i32) -> (i32, i32) {
    %c0_i32 = arith.constant 0 : i32
    %c0_i32_0 = arith.constant 0 : i32
    %c0_i32_1 = arith.constant 0 : i32
    return %c0_i32, %c0_i32_0 : i32, i32
  }
  func.func @transform_8(%arg0: i32) -> (i32, i32) {
    %c0_i32 = arith.constant 0 : i32
    %c0_i32_0 = arith.constant 0 : i32
    %c0_i32_1 = arith.constant 0 : i32
    return %c0_i32, %c0_i32_0 : i32, i32
  }
  func.func @transform_9(%arg0: i32) -> (i32, i32) {
    %c0_i32 = arith.constant 0 : i32
    %c0_i32_0 = arith.constant 0 : i32
    return %arg0, %c0_i32 : i32, i32
  }
}

</mosaic_0001>

<llo_original>
// kernel: tpu_custom_call.1
$region0: #{tpu_custom_call.1}
  #allocation0 [shape = 'u32[]', space=smem, size = 0x4, offset = 0x4, fixed_abs, tag = 'smem constant byte address 0x4 - core index']
  #allocation1 [shape = 'u32[72,128]{1,0:T(1,128)}', space=vmem, size = 0x9000, scoped, tag = 'internal scratch']
  #allocation2 [shape = 'f32[8,256]{1,0:T(8,128)}', space=vmem, size = 0x2000, scoped, tag = 'scratch operand']
  #allocation3 [shape = 'f32[8,128]{1,0:T(8,128)}', space=vmem, size = 0x1000, scoped, tag = 'scratch operand']
  %s0 = inlined_call_operand.hbm [shape: bf16[8,128], index: 0, kind: input, shape index: {}]
  %s1 = inlined_call_operand.hbm [shape: f32[8,128], index: 1, kind: input, shape index: {}]
  %s2 = inlined_call_operand.hbm [shape: bf16[128,256], index: 2, kind: input, shape index: {}]
  %s3 = inlined_call_operand.hbm [shape: bf16[128,256], index: 3, kind: input, shape index: {}]
  %s4 = inlined_call_operand.vmem [shape: f32[1,256], index: 4, kind: input, shape index: {}]
  %s5 = inlined_call_operand.hbm [shape: bf16[256,256], index: 5, kind: input, shape index: {}]
  %s6 = inlined_call_operand.vmem [shape: f32[1,256], index: 6, kind: input, shape index: {}]
  %s7 = inlined_call_operand.hbm [shape: bf16[256,128], index: 7, kind: input, shape index: {}]
  %s8 = inlined_call_operand.vmem [shape: f32[1,128], index: 8, kind: input, shape index: {}]
  %s9 = inlined_call_operand.hbm [shape: f32[8,128], index: 9, kind: output, shape index: {}]
  %s10 = sld [smem:[#allocation0]]
  $region70: #{tpu_custom_call.1} parent=0
    _
  %s12 = ssub.s32 1, %s10
  %s13 = scalar_select 0, %s12, %s10
  $region1: #{tpu_custom_call.1} parent=0
    #allocation4 [shape = 'u8[2048]{0}', space=vmem, size = 0x800, scoped, tag = 'input window, operand 0, single buffered']
    #allocation5 [shape = 's32[1]{0}', space=sflag, size = 0x4, scoped, tag = 'scoped memory for tpu_custom_call.1']
    #allocation6 [shape = 's32[1]{0}', space=sflag, size = 0x4, scoped, tag = 'scoped memory for tpu_custom_call.1']
    #allocation7 [shape = 'u8[4096]{0}', space=vmem, size = 0x1000, scoped, tag = 'input window, operand 1, single buffered']
    #allocation8 [shape = 's32[1]{0}', space=sflag, size = 0x4, scoped, tag = 'scoped memory for tpu_custom_call.1']
    #allocation9 [shape = 'u8[65536]{0}', space=vmem, size = 0x10000, scoped, tag = 'input window, operand 2, single buffered']
    #allocation10 [shape = 'u8[65536]{0}', space=vmem, size = 0x10000, scoped, tag = 'input window, operand 3, single buffered']
    #allocation11 [shape = 's32[1]{0}', space=sflag, size = 0x4, scoped, tag = 'scoped memory for tpu_custom_call.1']
    #allocation12 [shape = 'u8[131072]{0}', space=vmem, size = 0x20000, scoped, tag = 'input window, operand 5, single buffered']
    #allocation13 [shape = 'u8[65536]{0}', space=vmem, size = 0x10000, scoped, tag = 'input window, operand 7, single buffered']
    #allocation14 [shape = 's32[1]{0}', space=sflag, size = 0x4, scoped, tag = 'scoped memory for tpu_custom_call.1']
    #allocation15 [shape = 'u8[4096]{0}', space=vmem, size = 0x1000, scoped, tag = 'output window, operand 0, single buffered']
    %14 = vsyncpa [#allocation5], 0
    %15 = vsyncpa [#allocation8], 0
    %16 = vsyncpa [#allocation11], 0
    %17 = vsyncpa [#allocation14], 0
    %18 = vsyncpa [#allocation6], 0
    // Predicated region
    $region2: #{tpu_custom_call.1} parent=1 // pred_check
      _
    $region3: #{tpu_custom_call.1} parent=1 // pred_check_branch
      %20 = sbr.rel (0) target = $region5
    $region4: #{tpu_custom_call.1} parent=1 // pred_region
      %22 = vsyncadd [#allocation5], 0
      %s24 = sshll.u32 %s0, 4
      %s25 = int_to_ptr.hbm [resolvable:$true] %s24
      %s26 = sshll.u32 [#allocation4], 4
      %s27 = int_to_ptr.vmem [resolvable:$true] %s26
      %29 = dma.hbm_to_vmem [thread:$0]  %s25, 64, %s27, [#allocation5]
    $region5: #{tpu_custom_call.1} parent=1 // pred_fallthru
      _
    // Predicated region
    $region6: #{tpu_custom_call.1} parent=1 // pred_check
      _
    $region7: #{tpu_custom_call.1} parent=1 // pred_check_branch
      %31 = sbr.rel (0) target = $region9
    $region8: #{tpu_custom_call.1} parent=1 // pred_region
      %33 = vsyncadd [#allocation8], 0
      %s35 = sshll.u32 %s1, 4
      %s36 = int_to_ptr.hbm [resolvable:$true] %s35
      %s37 = sshll.u32 [#allocation7], 4
      %s38 = int_to_ptr.vmem [resolvable:$true] %s37
      %40 = dma.hbm_to_vmem [thread:$0]  %s36, 128, %s38, [#allocation8]
    $region9: #{tpu_custom_call.1} parent=1 // pred_fallthru
      _
    // Predicated region
    $region10: #{tpu_custom_call.1} parent=1 // pred_check
      _
    $region11: #{tpu_custom_call.1} parent=1 // pred_check_branch
      %42 = sbr.rel (0) target = $region13
    $region12: #{tpu_custom_call.1} parent=1 // pred_region
      %44 = vsyncadd [#allocation8], 0
      %s45 = sshll.u32 %s2, 4
      %s46 = int_to_ptr.hbm [resolvable:$true] %s45
      %s47 = sshll.u32 [#allocation9], 4
      %s48 = int_to_ptr.vmem [resolvable:$true] %s47
      %53 = dma.hbm_to_vmem [thread:$0]  %s46, 2048, %s48, [#allocation8], 128, 128, 8
    $region13: #{tpu_custom_call.1} parent=1 // pred_fallthru
      _
    // Predicated region
    $region14: #{tpu_custom_call.1} parent=1 // pred_check
      _
    $region15: #{tpu_custom_call.1} parent=1 // pred_check_branch
      %55 = sbr.rel (0) target = $region17
    $region16: #{tpu_custom_call.1} parent=1 // pred_region
      %57 = vsyncadd [#allocation11], 0
      %s58 = sshll.u32 %s3, 4
      %s59 = int_to_ptr.hbm [resolvable:$true] %s58
      %s60 = sshll.u32 [#allocation10], 4
      %s61 = int_to_ptr.vmem [resolvable:$true] %s60
      %66 = dma.hbm_to_vmem [thread:$0]  %s59, 2048, %s61, [#allocation11], 128, 128, 8
    $region17: #{tpu_custom_call.1} parent=1 // pred_fallthru
      _
    // Predicated region
    $region18: #{tpu_custom_call.1} parent=1 // pred_check
      _
    $region19: #{tpu_custom_call.1} parent=1 // pred_check_branch
      %68 = sbr.rel (0) target = $region21
    $region20: #{tpu_custom_call.1} parent=1 // pred_region
      _
    $region21: #{tpu_custom_call.1} parent=1 // pred_fallthru
      _
    // Predicated region
    $region22: #{tpu_custom_call.1} parent=1 // pred_check
      _
    $region23: #{tpu_custom_call.1} parent=1 // pred_check_branch
      %70 = sbr.rel (0) target = $region25
    $region24: #{tpu_custom_call.1} parent=1 // pred_region
      %72 = vsyncadd [#allocation11], 0
      %s73 = sshll.u32 %s5, 4
      %s74 = int_to_ptr.hbm [resolvable:$true] %s73
      %s75 = sshll.u32 [#allocation12], 4
      %s76 = int_to_ptr.vmem [resolvable:$true] %s75
      %81 = dma.hbm_to_vmem [thread:$0]  %s74, 4096, %s76, [#allocation11], 128, 128, 8
    $region25: #{tpu_custom_call.1} parent=1 // pred_fallthru
      _
    // Predicated region
    $region26: #{tpu_custom_call.1} parent=1 // pred_check
      _
    $region27: #{tpu_custom_call.1} parent=1 // pred_check_branch
      %83 = sbr.rel (0) target = $region29
    $region28: #{tpu_custom_call.1} parent=1 // pred_region
      _
    $region29: #{tpu_custom_call.1} parent=1 // pred_fallthru
      _
    // Predicated region
    $region30: #{tpu_custom_call.1} parent=1 // pred_check
      _
    $region31: #{tpu_custom_call.1} parent=1 // pred_check_branch
      %85 = sbr.rel (0) target = $region33
    $region32: #{tpu_custom_call.1} parent=1 // pred_region
      %87 = vsyncadd [#allocation14], 0
      %s88 = sshll.u32 %s7, 4
      %s89 = int_to_ptr.hbm [resolvable:$true] %s88
      %s90 = sshll.u32 [#allocation13], 4
      %s91 = int_to_ptr.vmem [resolvable:$true] %s90
      %96 = dma.hbm_to_vmem [thread:$0]  %s89, 2048, %s91, [#allocation14], 64, 64, 4
    $region33: #{tpu_custom_call.1} parent=1 // pred_fallthru
      _
    // Predicated region
    $region34: #{tpu_custom_call.1} parent=1 // pred_check
      _
    $region35: #{tpu_custom_call.1} parent=1 // pred_check_branch
      %98 = sbr.rel (0) target = $region37
    $region36: #{tpu_custom_call.1} parent=1 // pred_region
      _
    $region37: #{tpu_custom_call.1} parent=1 // pred_fallthru
      _
    // Predicated region
    $region38: #{tpu_custom_call.1} parent=1 // pred_check
      _
    $region39: #{tpu_custom_call.1} parent=1 // pred_check_branch
      %100 = sbr.rel (0) target = $region41
    $region40: #{tpu_custom_call.1} parent=1 // pred_region
      %102 = dma.done [#allocation5], 64
    $region41: #{tpu_custom_call.1} parent=1 // pred_fallthru
      _
    // Predicated region
    $region42: #{tpu_custom_call.1} parent=1 // pred_check
      _
    $region43: #{tpu_custom_call.1} parent=1 // pred_check_branch
      %104 = sbr.rel (0) target = $region45
    $region44: #{tpu_custom_call.1} parent=1 // pred_region
      %106 = dma.done [#allocation8], 128
    $region45: #{tpu_custom_call.1} parent=1 // pred_fallthru
      _
    // Predicated region
    $region46: #{tpu_custom_call.1} parent=1 // pred_check
      _
    $region47: #{tpu_custom_call.1} parent=1 // pred_check_branch
      %108 = sbr.rel (0) target = $region49
    $region48: #{tpu_custom_call.1} parent=1 // pred_region
      %110 = dma.done [#allocation8], 2048
    $region49: #{tpu_custom_call.1} parent=1 // pred_fallthru
      _
    // Predicated region
    $region50: #{tpu_custom_call.1} parent=1 // pred_check
      _
    $region51: #{tpu_custom_call.1} parent=1 // pred_check_branch
      %112 = sbr.rel (0) target = $region53
    $region52: #{tpu_custom_call.1} parent=1 // pred_region
      %114 = dma.done [#allocation11], 2048
    $region53: #{tpu_custom_call.1} parent=1 // pred_fallthru
      _
    // Predicated region
    $region54: #{tpu_custom_call.1} parent=1 // pred_check
      _
    $region55: #{tpu_custom_call.1} parent=1 // pred_check_branch
      %116 = sbr.rel (0) target = $region57
    $region56: #{tpu_custom_call.1} parent=1 // pred_region
      %118 = dma.done [#allocation11], 4096
    $region57: #{tpu_custom_call.1} parent=1 // pred_fallthru
      _
    // Predicated region
    $region58: #{tpu_custom_call.1} parent=1 // pred_check
      _
    $region59: #{tpu_custom_call.1} parent=1 // pred_check_branch
      %120 = sbr.rel (0) target = $region61
    $region60: #{tpu_custom_call.1} parent=1 // pred_region
      %122 = dma.done [#allocation14], 2048
    $region61: #{tpu_custom_call.1} parent=1 // pred_fallthru
      _
    %v123 = vld [vmem:[#allocation4] sm:$0xf]
    %v124 = vld [vmem:[#allocation9] sm:$0xff]
    %v125 = vld [vmem:[#allocation9 + $0x8] sm:$0xff]
    %v126 = vld [vmem:[#allocation9 + $0x10] sm:$0xff]
    %v127 = vld [vmem:[#allocation9 + $0x18] sm:$0xff]
    %v128 = vld [vmem:[#allocation9 + $0x20] sm:$0xff]
    %v129 = vld [vmem:[#allocation9 + $0x28] sm:$0xff]
    %v130 = vld [vmem:[#allocation9 + $0x30] sm:$0xff]
    %v131 = vld [vmem:[#allocation9 + $0x38] sm:$0xff]
    %v132 = vld [vmem:[#allocation9 + $0x40] sm:$0xff]
    %v133 = vld [vmem:[#allocation9 + $0x48] sm:$0xff]
    %v134 = vld [vmem:[#allocation9 + $0x50] sm:$0xff]
    %v135 = vld [vmem:[#allocation9 + $0x58] sm:$0xff]
    %v136 = vld [vmem:[#allocation9 + $0x60] sm:$0xff]
    %v137 = vld [vmem:[#allocation9 + $0x68] sm:$0xff]
    %v138 = vld [vmem:[#allocation9 + $0x70] sm:$0xff]
    %v139 = vld [vmem:[#allocation9 + $0x78] sm:$0xff]
    %v140 = vld [vmem:[%s4] sm:$0x3]
    %v142 = vperm.slane %v140, 0
    %v143 = vperm.slane %v140, 1
    %v162 = vunpack.c.l.b16 %v124
    %v163 = vunpack.c.h.b16 %v124
    %v164 = vunpack.c.l.b16 %v125
    %v165 = vunpack.c.h.b16 %v125
    %v166 = vunpack.c.l.b16 %v126
    %v167 = vunpack.c.h.b16 %v126
    %v168 = vunpack.c.l.b16 %v127
    %v169 = vunpack.c.h.b16 %v127
    %v170 = vunpack.c.l.b16 %v128
    %v171 = vunpack.c.h.b16 %v128
    %v172 = vunpack.c.l.b16 %v129
    %v173 = vunpack.c.h.b16 %v129
    %v174 = vunpack.c.l.b16 %v130
    %v175 = vunpack.c.h.b16 %v130
    %v176 = vunpack.c.l.b16 %v131
    %v177 = vunpack.c.h.b16 %v131
    %v178 = vunpack.c.l.b16 %v132
    %v179 = vunpack.c.h.b16 %v132
    %v180 = vunpack.c.l.b16 %v133
    %v181 = vunpack.c.h.b16 %v133
    %v182 = vunpack.c.l.b16 %v134
    %v183 = vunpack.c.h.b16 %v134
    %v184 = vunpack.c.l.b16 %v135
    %v185 = vunpack.c.h.b16 %v135
    %v186 = vunpack.c.l.b16 %v136
    %v187 = vunpack.c.h.b16 %v136
    %v188 = vunpack.c.l.b16 %v137
    %v189 = vunpack.c.h.b16 %v137
    %v190 = vunpack.c.l.b16 %v138
    %v191 = vunpack.c.h.b16 %v138
    %v192 = vunpack.c.l.b16 %v139
    %v193 = vunpack.c.h.b16 %v139
    %v194 = vpack.c.b16 %v164, %v162
    %v195 = vpack.c.b16 %v165, %v163
    %v196 = vpack.c.b16 %v168, %v166
    %v197 = vpack.c.b16 %v169, %v167
    %v198 = vpack.c.b16 %v172, %v170
    %v199 = vpack.c.b16 %v173, %v171
    %v200 = vpack.c.b16 %v176, %v174
    %v201 = vpack.c.b16 %v177, %v175
    %v202 = vpack.c.b16 %v180, %v178
    %v203 = vpack.c.b16 %v181, %v179
    %v204 = vpack.c.b16 %v184, %v182
    %v205 = vpack.c.b16 %v185, %v183
    %v206 = vpack.c.b16 %v188, %v186
    %v207 = vpack.c.b16 %v189, %v187
    %v208 = vpack.c.b16 %v192, %v190
    %v209 = vpack.c.b16 %v193, %v191
    %226 = vmatpush.bf16.msra.mxu0 %v208
    %227 = vmatpush.bf16.msra.mxu0 %v206
    %228 = vmatpush.bf16.msra.mxu0 %v204
    %229 = vmatpush.bf16.msra.mxu0 %v202
    %230 = vmatpush.bf16.msra.mxu0 %v200
    %231 = vmatpush.bf16.msra.mxu0 %v198
    %232 = vmatpush.bf16.msra.mxu0 %v196
    %233 = vmatpush.bf16.msra.mxu0 %v194
    %234 = vmatmul.bf16.gmra.mxu0 %v123
    %v235 = vpop.f32.mrf.mxu0
    %v236 = vadd.f32 %v142, %v235
    %v237 = vpop.f32.mrf.mxu0
    %238 = vdwg.mxu0
    %239 = vmatpush.bf16.msra.mxu0 %v209
    %240 = vmatpush.bf16.msra.mxu0 %v207
    %241 = vmatpush.bf16.msra.mxu0 %v205
    %242 = vmatpush.bf16.msra.mxu0 %v203
    %243 = vmatpush.bf16.msra.mxu0 %v201
    %244 = vmatpush.bf16.msra.mxu0 %v199
    %245 = vmatpush.bf16.msra.mxu0 %v197
    %246 = vmatpush.bf16.msra.mxu0 %v195
    %247 = vmatmul.bf16.gmra.mxu0 %v123
    %v248 = vpop.f32.mrf.mxu0
    %v249 = vadd.f32 %v143, %v248
    %v250 = vpop.f32.mrf.mxu0
    %251 = vdwg.mxu0
    %252 = vst [vmem:[#allocation2] sm:$0xff] %v236
    %253 = vst [vmem:[#allocation2 + $0x8] sm:$0xff] %v249
    %v254 = vld [vmem:[#allocation7] sm:$0xff]
    %255 = vst [vmem:[#allocation3] sm:$0xff] %v254
    %v256 = vld [vmem:[#allocation3] sm:$0xff]
    %v257 = vpack.c.bf16 %v256, %v256
    %v258 = vld [vmem:[#allocation2] sm:$0xff]
    %v259 = vld [vmem:[#allocation2 + $0x8] sm:$0xff]
    %v260 = vld [vmem:[#allocation10] sm:$0xff]
    %v261 = vld [vmem:[#allocation10 + $0x8] sm:$0xff]
    %v262 = vld [vmem:[#allocation10 + $0x10] sm:$0xff]
    %v263 = vld [vmem:[#allocation10 + $0x18] sm:$0xff]
    %v264 = vld [vmem:[#allocation10 + $0x20] sm:$0xff]
    %v265 = vld [vmem:[#allocation10 + $0x28] sm:$0xff]
    %v266 = vld [vmem:[#allocation10 + $0x30] sm:$0xff]
    %v267 = vld [vmem:[#allocation10 + $0x38] sm:$0xff]
    %v268 = vld [vmem:[#allocation10 + $0x40] sm:$0xff]
    %v269 = vld [vmem:[#allocation10 + $0x48] sm:$0xff]
    %v270 = vld [vmem:[#allocation10 + $0x50] sm:$0xff]
    %v271 = vld [vmem:[#allocation10 + $0x58] sm:$0xff]
    %v272 = vld [vmem:[#allocation10 + $0x60] sm:$0xff]
    %v273 = vld [vmem:[#allocation10 + $0x68] sm:$0xff]
    %v274 = vld [vmem:[#allocation10 + $0x70] sm:$0xff]
    %v275 = vld [vmem:[#allocation10 + $0x78] sm:$0xff]
    %v292 = vunpack.c.l.b16 %v260
    %v293 = vunpack.c.h.b16 %v260
    %v294 = vunpack.c.l.b16 %v261
    %v295 = vunpack.c.h.b16 %v261
    %v296 = vunpack.c.l.b16 %v262
    %v297 = vunpack.c.h.b16 %v262
    %v298 = vunpack.c.l.b16 %v263
    %v299 = vunpack.c.h.b16 %v263
    %v300 = vunpack.c.l.b16 %v264
    %v301 = vunpack.c.h.b16 %v264
    %v302 = vunpack.c.l.b16 %v265
    %v303 = vunpack.c.h.b16 %v265
    %v304 = vunpack.c.l.b16 %v266
    %v305 = vunpack.c.h.b16 %v266
    %v306 = vunpack.c.l.b16 %v267
    %v307 = vunpack.c.h.b16 %v267
    %v308 = vunpack.c.l.b16 %v268
    %v309 = vunpack.c.h.b16 %v268
    %v310 = vunpack.c.l.b16 %v269
    %v311 = vunpack.c.h.b16 %v269
    %v312 = vunpack.c.l.b16 %v270
    %v313 = vunpack.c.h.b16 %v270
    %v314 = vunpack.c.l.b16 %v271
    %v315 = vunpack.c.h.b16 %v271
    %v316 = vunpack.c.l.b16 %v272
    %v317 = vunpack.c.h.b16 %v272
    %v318 = vunpack.c.l.b16 %v273
    %v319 = vunpack.c.h.b16 %v273
    %v320 = vunpack.c.l.b16 %v274
    %v321 = vunpack.c.h.b16 %v274
    %v322 = vunpack.c.l.b16 %v275
    %v323 = vunpack.c.h.b16 %v275
    %v324 = vpack.c.b16 %v294, %v292
    %v325 = vpack.c.b16 %v295, %v293
    %v326 = vpack.c.b16 %v298, %v296
    %v327 = vpack.c.b16 %v299, %v297
    %v328 = vpack.c.b16 %v302, %v300
    %v329 = vpack.c.b16 %v303, %v301
    %v330 = vpack.c.b16 %v306, %v304
    %v331 = vpack.c.b16 %v307, %v305
    %v332 = vpack.c.b16 %v310, %v308
    %v333 = vpack.c.b16 %v311, %v309
    %v334 = vpack.c.b16 %v314, %v312
    %v335 = vpack.c.b16 %v315, %v313
    %v336 = vpack.c.b16 %v318, %v316
    %v337 = vpack.c.b16 %v319, %v317
    %v338 = vpack.c.b16 %v322, %v320
    %v339 = vpack.c.b16 %v323, %v321
    %356 = vmatpush.bf16.msra.mxu0 %v338
    %357 = vmatpush.bf16.msra.mxu0 %v336
    %358 = vmatpush.bf16.msra.mxu0 %v334
    %359 = vmatpush.bf16.msra.mxu0 %v332
    %360 = vmatpush.bf16.msra.mxu0 %v330
    %361 = vmatpush.bf16.msra.mxu0 %v328
    %362 = vmatpush.bf16.msra.mxu0 %v326
    %363 = vmatpush.bf16.msra.mxu0 %v324
    %364 = vmatmul.bf16.gmra.mxu0 %v257
    %v365 = vpop.f32.mrf.mxu0
    %v366 = vadd.f32 0.0, %v365
    %v367 = vpop.f32.mrf.mxu0
    %368 = vdwg.mxu0
    %369 = vmatpush.bf16.msra.mxu0 %v339
    %370 = vmatpush.bf16.msra.mxu0 %v337
    %371 = vmatpush.bf16.msra.mxu0 %v335
    %372 = vmatpush.bf16.msra.mxu0 %v333
    %373 = vmatpush.bf16.msra.mxu0 %v331
    %374 = vmatpush.bf16.msra.mxu0 %v329
    %375 = vmatpush.bf16.msra.mxu0 %v327
    %376 = vmatpush.bf16.msra.mxu0 %v325
    %377 = vmatmul.bf16.gmra.mxu0 %v257
    %v378 = vpop.f32.mrf.mxu0
    %v379 = vadd.f32 0.0, %v378
    %v380 = vpop.f32.mrf.mxu0
    %381 = vdwg.mxu0
    %v382 = vadd.f32 %v258, %v366
    %v383 = vadd.f32 %v259, %v379
    %v384 = vmax.f32 %v382, 0.0
    %v385 = vmax.f32 %v383, 0.0
    %v386 = vpack.c.bf16 %v384, %v384
    %v387 = vpack.c.bf16 %v385, %v385
    %v388 = vld [vmem:[#allocation12] sm:$0xff]
    %v389 = vld [vmem:[#allocation12 + $0x8] sm:$0xff]
    %v390 = vld [vmem:[#allocation12 + $0x10] sm:$0xff]
    %v391 = vld [vmem:[#allocation12 + $0x18] sm:$0xff]
    %v392 = vld [vmem:[#allocation12 + $0x20] sm:$0xff]
    %v393 = vld [vmem:[#allocation12 + $0x28] sm:$0xff]
    %v394 = vld [vmem:[#allocation12 + $0x30] sm:$0xff]
    %v395 = vld [vmem:[#allocation12 + $0x38] sm:$0xff]
    %v396 = vld [vmem:[#allocation12 + $0x40] sm:$0xff]
    %v397 = vld [vmem:[#allocation12 + $0x48] sm:$0xff]
    %v398 = vld [vmem:[#allocation12 + $0x50] sm:$0xff]
    %v399 = vld [vmem:[#allocation12 + $0x58] sm:$0xff]
    %v400 = vld [vmem:[#allocation12 + $0x60] sm:$0xff]
    %v401 = vld [vmem:[#allocation12 + $0x68] sm:$0xff]
    %v402 = vld [vmem:[#allocation12 + $0x70] sm:$0xff]
    %v403 = vld [vmem:[#allocation12 + $0x78] sm:$0xff]
    %v404 = vld [vmem:[#allocation12 + $0x80] sm:$0xff]
    %v405 = vld [vmem:[#allocation12 + $0x88] sm:$0xff]
    %v406 = vld [vmem:[#allocation12 + $0x90] sm:$0xff]
    %v407 = vld [vmem:[#allocation12 + $0x98] sm:$0xff]
    %v408 = vld [vmem:[#allocation12 + $0xa0] sm:$0xff]
    %v409 = vld [vmem:[#allocation12 + $0xa8] sm:$0xff]
    %v410 = vld [vmem:[#allocation12 + $0xb0] sm:$0xff]
    %v411 = vld [vmem:[#allocation12 + $0xb8] sm:$0xff]
    %v412 = vld [vmem:[#allocation12 + $0xc0] sm:$0xff]
    %v413 = vld [vmem:[#allocation12 + $0xc8] sm:$0xff]
    %v414 = vld [vmem:[#allocation12 + $0xd0] sm:$0xff]
    %v415 = vld [vmem:[#allocation12 + $0xd8] sm:$0xff]
    %v416 = vld [vmem:[#allocation12 + $0xe0] sm:$0xff]
    %v417 = vld [vmem:[#allocation12 + $0xe8] sm:$0xff]
    %v418 = vld [vmem:[#allocation12 + $0xf0] sm:$0xff]
    %v419 = vld [vmem:[#allocation12 + $0xf8] sm:$0xff]
    %v420 = vld [vmem:[%s6] sm:$0x3]
    %v422 = vperm.slane %v420, 0
    %v423 = vperm.slane %v420, 1
    %v458 = vunpack.c.l.b16 %v388
    %v459 = vunpack.c.h.b16 %v388
    %v460 = vunpack.c.l.b16 %v389
    %v461 = vunpack.c.h.b16 %v389
    %v462 = vunpack.c.l.b16 %v390
    %v463 = vunpack.c.h.b16 %v390
    %v464 = vunpack.c.l.b16 %v391
    %v465 = vunpack.c.h.b16 %v391
    %v466 = vunpack.c.l.b16 %v392
    %v467 = vunpack.c.h.b16 %v392
    %v468 = vunpack.c.l.b16 %v393
    %v469 = vunpack.c.h.b16 %v393
    %v470 = vunpack.c.l.b16 %v394
    %v471 = vunpack.c.h.b16 %v394
    %v472 = vunpack.c.l.b16 %v395
    %v473 = vunpack.c.h.b16 %v395
    %v474 = vunpack.c.l.b16 %v396
    %v475 = vunpack.c.h.b16 %v396
    %v476 = vunpack.c.l.b16 %v397
    %v477 = vunpack.c.h.b16 %v397
    %v478 = vunpack.c.l.b16 %v398
    %v479 = vunpack.c.h.b16 %v398
    %v480 = vunpack.c.l.b16 %v399
    %v481 = vunpack.c.h.b16 %v399
    %v482 = vunpack.c.l.b16 %v400
    %v483 = vunpack.c.h.b16 %v400
    %v484 = vunpack.c.l.b16 %v401
    %v485 = vunpack.c.h.b16 %v401
    %v486 = vunpack.c.l.b16 %v402
    %v487 = vunpack.c.h.b16 %v402
    %v488 = vunpack.c.l.b16 %v403
    %v489 = vunpack.c.h.b16 %v403
    %v490 = vunpack.c.l.b16 %v404
    %v491 = vunpack.c.h.b16 %v404
    %v492 = vunpack.c.l.b16 %v405
    %v493 = vunpack.c.h.b16 %v405
    %v494 = vunpack.c.l.b16 %v406
    %v495 = vunpack.c.h.b16 %v406
    %v496 = vunpack.c.l.b16 %v407
    %v497 = vunpack.c.h.b16 %v407
    %v498 = vunpack.c.l.b16 %v408
    %v499 = vunpack.c.h.b16 %v408
    %v500 = vunpack.c.l.b16 %v409
    %v501 = vunpack.c.h.b16 %v409
    %v502 = vunpack.c.l.b16 %v410
    %v503 = vunpack.c.h.b16 %v410
    %v504 = vunpack.c.l.b16 %v411
    %v505 = vunpack.c.h.b16 %v411
    %v506 = vunpack.c.l.b16 %v412
    %v507 = vunpack.c.h.b16 %v412
    %v508 = vunpack.c.l.b16 %v413
    %v509 = vunpack.c.h.b16 %v413
    %v510 = vunpack.c.l.b16 %v414
    %v511 = vunpack.c.h.b16 %v414
    %v512 = vunpack.c.l.b16 %v415
    %v513 = vunpack.c.h.b16 %v415
    %v514 = vunpack.c.l.b16 %v416
    %v515 = vunpack.c.h.b16 %v416
    %v516 = vunpack.c.l.b16 %v417
    %v517 = vunpack.c.h.b16 %v417
    %v518 = vunpack.c.l.b16 %v418
    %v519 = vunpack.c.h.b16 %v418
    %v520 = vunpack.c.l.b16 %v419
    %v521 = vunpack.c.h.b16 %v419
    %v522 = vpack.c.b16 %v460, %v458
    %v523 = vpack.c.b16 %v461, %v459
    %v524 = vpack.c.b16 %v464, %v462
    %v525 = vpack.c.b16 %v465, %v463
    %v526 = vpack.c.b16 %v468, %v466
    %v527 = vpack.c.b16 %v469, %v467
    %v528 = vpack.c.b16 %v472, %v470
    %v529 = vpack.c.b16 %v473, %v471
    %v530 = vpack.c.b16 %v476, %v474
    %v531 = vpack.c.b16 %v477, %v475
    %v532 = vpack.c.b16 %v480, %v478
    %v533 = vpack.c.b16 %v481, %v479
    %v534 = vpack.c.b16 %v484, %v482
    %v535 = vpack.c.b16 %v485, %v483
    %v536 = vpack.c.b16 %v488, %v486
    %v537 = vpack.c.b16 %v489, %v487
    %v538 = vpack.c.b16 %v492, %v490
    %v539 = vpack.c.b16 %v493, %v491
    %v540 = vpack.c.b16 %v496, %v494
    %v541 = vpack.c.b16 %v497, %v495
    %v542 = vpack.c.b16 %v500, %v498
    %v543 = vpack.c.b16 %v501, %v499
    %v544 = vpack.c.b16 %v504, %v502
    %v545 = vpack.c.b16 %v505, %v503
    %v546 = vpack.c.b16 %v508, %v506
    %v547 = vpack.c.b16 %v509, %v507
    %v548 = vpack.c.b16 %v512, %v510
    %v549 = vpack.c.b16 %v513, %v511
    %v550 = vpack.c.b16 %v516, %v514
    %v551 = vpack.c.b16 %v517, %v515
    %v552 = vpack.c.b16 %v520, %v518
    %v553 = vpack.c.b16 %v521, %v519
    %586 = vmatpush.bf16.msra.mxu0 %v536
    %587 = vmatpush.bf16.msra.mxu0 %v534
    %588 = vmatpush.bf16.msra.mxu0 %v532
    %589 = vmatpush.bf16.msra.mxu0 %v530
    %590 = vmatpush.bf16.msra.mxu0 %v528
    %591 = vmatpush.bf16.msra.mxu0 %v526
    %592 = vmatpush.bf16.msra.mxu0 %v524
    %593 = vmatpush.bf16.msra.mxu0 %v522
    %594 = vmatmul.bf16.gmra.mxu0 %v386
    %v595 = vpop.f32.mrf.mxu0
    %v596 = vadd.f32 %v422, %v595
    %v597 = vpop.f32.mrf.mxu0
    %598 = vdwg.mxu0
    %599 = vmatpush.bf16.msra.mxu0 %v552
    %600 = vmatpush.bf16.msra.mxu0 %v550
    %601 = vmatpush.bf16.msra.mxu0 %v548
    %602 = vmatpush.bf16.msra.mxu0 %v546
    %603 = vmatpush.bf16.msra.mxu0 %v544
    %604 = vmatpush.bf16.msra.mxu0 %v542
    %605 = vmatpush.bf16.msra.mxu0 %v540
    %606 = vmatpush.bf16.msra.mxu0 %v538
    %607 = vmatmul.bf16.gmra.mxu0 %v387
    %v608 = vpop.f32.mrf.mxu0
    %v609 = vadd.f32 %v596, %v608
    %v610 = vpop.f32.mrf.mxu0
    %611 = vdwg.mxu0
    %612 = vmatpush.bf16.msra.mxu0 %v537
    %613 = vmatpush.bf16.msra.mxu0 %v535
    %614 = vmatpush.bf16.msra.mxu0 %v533
    %615 = vmatpush.bf16.msra.mxu0 %v531
    %616 = vmatpush.bf16.msra.mxu0 %v529
    %617 = vmatpush.bf16.msra.mxu0 %v527
    %618 = vmatpush.bf16.msra.mxu0 %v525
    %619 = vmatpush.bf16.msra.mxu0 %v523
    %620 = vmatmul.bf16.gmra.mxu0 %v386
    %v621 = vpop.f32.mrf.mxu0
    %v622 = vadd.f32 %v423, %v621
    %v623 = vpop.f32.mrf.mxu0
    %624 = vdwg.mxu0
    %625 = vmatpush.bf16.msra.mxu0 %v553
    %626 = vmatpush.bf16.msra.mxu0 %v551
    %627 = vmatpush.bf16.msra.mxu0 %v549
    %628 = vmatpush.bf16.msra.mxu0 %v547
    %629 = vmatpush.bf16.msra.mxu0 %v545
    %630 = vmatpush.bf16.msra.mxu0 %v543
    %631 = vmatpush.bf16.msra.mxu0 %v541
    %632 = vmatpush.bf16.msra.mxu0 %v539
    %633 = vmatmul.bf16.gmra.mxu0 %v387
    %v634 = vpop.f32.mrf.mxu0
    %v635 = vadd.f32 %v622, %v634
    %v636 = vpop.f32.mrf.mxu0
    %637 = vdwg.mxu0
    %v638 = vmax.f32 %v609, 0.0
    %v639 = vmax.f32 %v635, 0.0
    %v640 = vpack.c.bf16 %v638, %v638
    %v641 = vpack.c.bf16 %v639, %v639
    %v642 = vld [vmem:[#allocation13] sm:$0xf]
    %v643 = vld [vmem:[#allocation13 + $0x4] sm:$0xf]
    %v644 = vld [vmem:[#allocation13 + $0x8] sm:$0xf]
    %v645 = vld [vmem:[#allocation13 + $0xc] sm:$0xf]
    %v646 = vld [vmem:[#allocation13 + $0x10] sm:$0xf]
    %v647 = vld [vmem:[#allocation13 + $0x14] sm:$0xf]
    %v648 = vld [vmem:[#allocation13 + $0x18] sm:$0xf]
    %v649 = vld [vmem:[#allocation13 + $0x1c] sm:$0xf]
    %v650 = vld [vmem:[#allocation13 + $0x20] sm:$0xf]
    %v651 = vld [vmem:[#allocation13 + $0x24] sm:$0xf]
    %v652 = vld [vmem:[#allocation13 + $0x28] sm:$0xf]
    %v653 = vld [vmem:[#allocation13 + $0x2c] sm:$0xf]
    %v654 = vld [vmem:[#allocation13 + $0x30] sm:$0xf]
    %v655 = vld [vmem:[#allocation13 + $0x34] sm:$0xf]
    %v656 = vld [vmem:[#allocation13 + $0x38] sm:$0xf]
    %v657 = vld [vmem:[#allocation13 + $0x3c] sm:$0xf]
    %v658 = vld [vmem:[#allocation13 + $0x40] sm:$0xf]
    %v659 = vld [vmem:[#allocation13 + $0x44] sm:$0xf]
    %v660 = vld [vmem:[#allocation13 + $0x48] sm:$0xf]
    %v661 = vld [vmem:[#allocation13 + $0x4c] sm:$0xf]
    %v662 = vld [vmem:[#allocation13 + $0x50] sm:$0xf]
    %v663 = vld [vmem:[#allocation13 + $0x54] sm:$0xf]
    %v664 = vld [vmem:[#allocation13 + $0x58] sm:$0xf]
    %v665 = vld [vmem:[#allocation13 + $0x5c] sm:$0xf]
    %v666 = vld [vmem:[#allocation13 + $0x60] sm:$0xf]
    %v667 = vld [vmem:[#allocation13 + $0x64] sm:$0xf]
    %v668 = vld [vmem:[#allocation13 + $0x68] sm:$0xf]
    %v669 = vld [vmem:[#allocation13 + $0x6c] sm:$0xf]
    %v670 = vld [vmem:[#allocation13 + $0x70] sm:$0xf]
    %v671 = vld [vmem:[#allocation13 + $0x74] sm:$0xf]
    %v672 = vld [vmem:[#allocation13 + $0x78] sm:$0xf]
    %v673 = vld [vmem:[#allocation13 + $0x7c] sm:$0xf]
    %v674 = vld [vmem:[%s8] sm:$0x1]
    %v676 = vperm.slane %v674, 0
    %v710 = vunpack.c.l.b16 %v642
    %v711 = vunpack.c.l.b16 %v643
    %v712 = vunpack.c.l.b16 %v644
    %v713 = vunpack.c.l.b16 %v645
    %v714 = vunpack.c.l.b16 %v646
    %v715 = vunpack.c.l.b16 %v647
    %v716 = vunpack.c.l.b16 %v648
    %v717 = vunpack.c.l.b16 %v649
    %v718 = vunpack.c.l.b16 %v650
    %v719 = vunpack.c.l.b16 %v651
    %v720 = vunpack.c.l.b16 %v652
    %v721 = vunpack.c.l.b16 %v653
    %v722 = vunpack.c.l.b16 %v654
    %v723 = vunpack.c.l.b16 %v655
    %v724 = vunpack.c.l.b16 %v656
    %v725 = vunpack.c.l.b16 %v657
    %v726 = vunpack.c.l.b16 %v658
    %v727 = vunpack.c.l.b16 %v659
    %v728 = vunpack.c.l.b16 %v660
    %v729 = vunpack.c.l.b16 %v661
    %v730 = vunpack.c.l.b16 %v662
    %v731 = vunpack.c.l.b16 %v663
    %v732 = vunpack.c.l.b16 %v664
    %v733 = vunpack.c.l.b16 %v665
    %v734 = vunpack.c.l.b16 %v666
    %v735 = vunpack.c.l.b16 %v667
    %v736 = vunpack.c.l.b16 %v668
    %v737 = vunpack.c.l.b16 %v669
    %v738 = vunpack.c.l.b16 %v670
    %v739 = vunpack.c.l.b16 %v671
    %v740 = vunpack.c.l.b16 %v672
    %v741 = vunpack.c.l.b16 %v673
    %v742 = vpack.c.b16 %v711, %v710
    %v743 = vpack.c.b16 %v713, %v712
    %v744 = vpack.c.b16 %v715, %v714
    %v745 = vpack.c.b16 %v717, %v716
    %v746 = vpack.c.b16 %v719, %v718
    %v747 = vpack.c.b16 %v721, %v720
    %v748 = vpack.c.b16 %v723, %v722
    %v749 = vpack.c.b16 %v725, %v724
    %v750 = vpack.c.b16 %v727, %v726
    %v751 = vpack.c.b16 %v729, %v728
    %v752 = vpack.c.b16 %v731, %v730
    %v753 = vpack.c.b16 %v733, %v732
    %v754 = vpack.c.b16 %v735, %v734
    %v755 = vpack.c.b16 %v737, %v736
    %v756 = vpack.c.b16 %v739, %v738
    %v757 = vpack.c.b16 %v741, %v740
    %774 = vmatpush.bf16.msra.mxu0 %v749
    %775 = vmatpush.bf16.msra.mxu0 %v748
    %776 = vmatpush.bf16.msra.mxu0 %v747
    %777 = vmatpush.bf16.msra.mxu0 %v746
    %778 = vmatpush.bf16.msra.mxu0 %v745
    %779 = vmatpush.bf16.msra.mxu0 %v744
    %780 = vmatpush.bf16.msra.mxu0 %v743
    %781 = vmatpush.bf16.msra.mxu0 %v742
    %782 = vmatmul.bf16.gmra.mxu0 %v640
    %v783 = vpop.f32.mrf.mxu0
    %v784 = vadd.f32 %v676, %v783
    %v785 = vpop.f32.mrf.mxu0
    %786 = vdwg.mxu0
    %787 = vmatpush.bf16.msra.mxu0 %v757
    %788 = vmatpush.bf16.msra.mxu0 %v756
    %789 = vmatpush.bf16.msra.mxu0 %v755
    %790 = vmatpush.bf16.msra.mxu0 %v754
    %791 = vmatpush.bf16.msra.mxu0 %v753
    %792 = vmatpush.bf16.msra.mxu0 %v752
    %793 = vmatpush.bf16.msra.mxu0 %v751
    %794 = vmatpush.bf16.msra.mxu0 %v750
    %795 = vmatmul.bf16.gmra.mxu0 %v641
    %v796 = vpop.f32.mrf.mxu0
    %v797 = vadd.f32 %v784, %v796
    %v798 = vpop.f32.mrf.mxu0
    %799 = vdwg.mxu0
    %v800 = vtanh.pop %v797
    %v801 = vadd.f32 %v256, %v800
    %802 = vst [vmem:[#allocation3] sm:$0xff] %v801
    %v803 = vld [vmem:[#allocation3] sm:$0xff]
    %v804 = vpack.c.bf16 %v803, %v803
    %v805 = vld [vmem:[#allocation2] sm:$0xff]
    %v806 = vld [vmem:[#allocation2 + $0x8] sm:$0xff]
    %v807 = vld [vmem:[#allocation10] sm:$0xff]
    %v808 = vld [vmem:[#allocation10 + $0x8] sm:$0xff]
    %v809 = vld [vmem:[#allocation10 + $0x10] sm:$0xff]
    %v810 = vld [vmem:[#allocation10 + $0x18] sm:$0xff]
    %v811 = vld [vmem:[#allocation10 + $0x20] sm:$0xff]
    %v812 = vld [vmem:[#allocation10 + $0x28] sm:$0xff]
    %v813 = vld [vmem:[#allocation10 + $0x30] sm:$0xff]
    %v814 = vld [vmem:[#allocation10 + $0x38] sm:$0xff]
    %v815 = vld [vmem:[#allocation10 + $0x40] sm:$0xff]
    %v816 = vld [vmem:[#allocation10 + $0x48] sm:$0xff]
    %v817 = vld [vmem:[#allocation10 + $0x50] sm:$0xff]
    %v818 = vld [vmem:[#allocation10 + $0x58] sm:$0xff]
    %v819 = vld [vmem:[#allocation10 + $0x60] sm:$0xff]
    %v820 = vld [vmem:[#allocation10 + $0x68] sm:$0xff]
    %v821 = vld [vmem:[#allocation10 + $0x70] sm:$0xff]
    %v822 = vld [vmem:[#allocation10 + $0x78] sm:$0xff]
    %v839 = vunpack.c.l.b16 %v807
    %v840 = vunpack.c.h.b16 %v807
    %v841 = vunpack.c.l.b16 %v808
    %v842 = vunpack.c.h.b16 %v808
    %v843 = vunpack.c.l.b16 %v809
    %v844 = vunpack.c.h.b16 %v809
    %v845 = vunpack.c.l.b16 %v810
    %v846 = vunpack.c.h.b16 %v810
    %v847 = vunpack.c.l.b16 %v811
    %v848 = vunpack.c.h.b16 %v811
    %v849 = vunpack.c.l.b16 %v812
    %v850 = vunpack.c.h.b16 %v812
    %v851 = vunpack.c.l.b16 %v813
    %v852 = vunpack.c.h.b16 %v813
    %v853 = vunpack.c.l.b16 %v814
    %v854 = vunpack.c.h.b16 %v814
    %v855 = vunpack.c.l.b16 %v815
    %v856 = vunpack.c.h.b16 %v815
    %v857 = vunpack.c.l.b16 %v816
    %v858 = vunpack.c.h.b16 %v816
    %v859 = vunpack.c.l.b16 %v817
    %v860 = vunpack.c.h.b16 %v817
    %v861 = vunpack.c.l.b16 %v818
    %v862 = vunpack.c.h.b16 %v818
    %v863 = vunpack.c.l.b16 %v819
    %v864 = vunpack.c.h.b16 %v819
    %v865 = vunpack.c.l.b16 %v820
    %v866 = vunpack.c.h.b16 %v820
    %v867 = vunpack.c.l.b16 %v821
    %v868 = vunpack.c.h.b16 %v821
    %v869 = vunpack.c.l.b16 %v822
    %v870 = vunpack.c.h.b16 %v822
    %v871 = vpack.c.b16 %v841, %v839
    %v872 = vpack.c.b16 %v842, %v840
    %v873 = vpack.c.b16 %v845, %v843
    %v874 = vpack.c.b16 %v846, %v844
    %v875 = vpack.c.b16 %v849, %v847
    %v876 = vpack.c.b16 %v850, %v848
    %v877 = vpack.c.b16 %v853, %v851
    %v878 = vpack.c.b16 %v854, %v852
    %v879 = vpack.c.b16 %v857, %v855
    %v880 = vpack.c.b16 %v858, %v856
    %v881 = vpack.c.b16 %v861, %v859
    %v882 = vpack.c.b16 %v862, %v860
    %v883 = vpack.c.b16 %v865, %v863
    %v884 = vpack.c.b16 %v866, %v864
    %v885 = vpack.c.b16 %v869, %v867
    %v886 = vpack.c.b16 %v870, %v868
    %903 = vmatpush.bf16.msra.mxu0 %v885
    %904 = vmatpush.bf16.msra.mxu0 %v883
    %905 = vmatpush.bf16.msra.mxu0 %v881
    %906 = vmatpush.bf16.msra.mxu0 %v879
    %907 = vmatpush.bf16.msra.mxu0 %v877
    %908 = vmatpush.bf16.msra.mxu0 %v875
    %909 = vmatpush.bf16.msra.mxu0 %v873
    %910 = vmatpush.bf16.msra.mxu0 %v871
    %911 = vmatmul.bf16.gmra.mxu0 %v804
    %v912 = vpop.f32.mrf.mxu0
    %v913 = vadd.f32 0.0, %v912
    %v914 = vpop.f32.mrf.mxu0
    %915 = vdwg.mxu0
    %916 = vmatpush.bf16.msra.mxu0 %v886
    %917 = vmatpush.bf16.msra.mxu0 %v884
    %918 = vmatpush.bf16.msra.mxu0 %v882
    %919 = vmatpush.bf16.msra.mxu0 %v880
    %920 = vmatpush.bf16.msra.mxu0 %v878
    %921 = vmatpush.bf16.msra.mxu0 %v876
    %922 = vmatpush.bf16.msra.mxu0 %v874
    %923 = vmatpush.bf16.msra.mxu0 %v872
    %924 = vmatmul.bf16.gmra.mxu0 %v804
    %v925 = vpop.f32.mrf.mxu0
    %v926 = vadd.f32 0.0, %v925
    %v927 = vpop.f32.mrf.mxu0
    %928 = vdwg.mxu0
    %v929 = vadd.f32 %v805, %v913
    %v930 = vadd.f32 %v806, %v926
    %v931 = vmax.f32 %v929, 0.0
    %v932 = vmax.f32 %v930, 0.0
    %v933 = vpack.c.bf16 %v931, %v931
    %v934 = vpack.c.bf16 %v932, %v932
    %v935 = vld [vmem:[#allocation12] sm:$0xff]
    %v936 = vld [vmem:[#allocation12 + $0x8] sm:$0xff]
    %v937 = vld [vmem:[#allocation12 + $0x10] sm:$0xff]
    %v938 = vld [vmem:[#allocation12 + $0x18] sm:$0xff]
    %v939 = vld [vmem:[#allocation12 + $0x20] sm:$0xff]
    %v940 = vld [vmem:[#allocation12 + $0x28] sm:$0xff]
    %v941 = vld [vmem:[#allocation12 + $0x30] sm:$0xff]
    %v942 = vld [vmem:[#allocation12 + $0x38] sm:$0xff]
    %v943 = vld [vmem:[#allocation12 + $0x40] sm:$0xff]
    %v944 = vld [vmem:[#allocation12 + $0x48] sm:$0xff]
    %v945 = vld [vmem:[#allocation12 + $0x50] sm:$0xff]
    %v946 = vld [vmem:[#allocation12 + $0x58] sm:$0xff]
    %v947 = vld [vmem:[#allocation12 + $0x60] sm:$0xff]
    %v948 = vld [vmem:[#allocation12 + $0x68] sm:$0xff]
    %v949 = vld [vmem:[#allocation12 + $0x70] sm:$0xff]
    %v950 = vld [vmem:[#allocation12 + $0x78] sm:$0xff]
    %v951 = vld [vmem:[#allocation12 + $0x80] sm:$0xff]
    %v952 = vld [vmem:[#allocation12 + $0x88] sm:$0xff]
    %v953 = vld [vmem:[#allocation12 + $0x90] sm:$0xff]
    %v954 = vld [vmem:[#allocation12 + $0x98] sm:$0xff]
    %v955 = vld [vmem:[#allocation12 + $0xa0] sm:$0xff]
    %v956 = vld [vmem:[#allocation12 + $0xa8] sm:$0xff]
    %v957 = vld [vmem:[#allocation12 + $0xb0] sm:$0xff]
    %v958 = vld [vmem:[#allocation12 + $0xb8] sm:$0xff]
    %v959 = vld [vmem:[#allocation12 + $0xc0] sm:$0xff]
    %v960 = vld [vmem:[#allocation12 + $0xc8] sm:$0xff]
    %v961 = vld [vmem:[#allocation12 + $0xd0] sm:$0xff]
    %v962 = vld [vmem:[#allocation12 + $0xd8] sm:$0xff]
    %v963 = vld [vmem:[#allocation12 + $0xe0] sm:$0xff]
    %v964 = vld [vmem:[#allocation12 + $0xe8] sm:$0xff]
    %v965 = vld [vmem:[#allocation12 + $0xf0] sm:$0xff]
    %v966 = vld [vmem:[#allocation12 + $0xf8] sm:$0xff]
    %v967 = vld [vmem:[%s6] sm:$0x3]
    %v969 = vperm.slane %v967, 0
    %v970 = vperm.slane %v967, 1
    %v1005 = vunpack.c.l.b16 %v935
    %v1006 = vunpack.c.h.b16 %v935
    %v1007 = vunpack.c.l.b16 %v936
    %v1008 = vunpack.c.h.b16 %v936
    %v1009 = vunpack.c.l.b16 %v937
    %v1010 = vunpack.c.h.b16 %v937
    %v1011 = vunpack.c.l.b16 %v938
    %v1012 = vunpack.c.h.b16 %v938
    %v1013 = vunpack.c.l.b16 %v939
    %v1014 = vunpack.c.h.b16 %v939
    %v1015 = vunpack.c.l.b16 %v940
    %v1016 = vunpack.c.h.b16 %v940
    %v1017 = vunpack.c.l.b16 %v941
    %v1018 = vunpack.c.h.b16 %v941
    %v1019 = vunpack.c.l.b16 %v942
    %v1020 = vunpack.c.h.b16 %v942
    %v1021 = vunpack.c.l.b16 %v943
    %v1022 = vunpack.c.h.b16 %v943
    %v1023 = vunpack.c.l.b16 %v944
    %v1024 = vunpack.c.h.b16 %v944
    %v1025 = vunpack.c.l.b16 %v945
    %v1026 = vunpack.c.h.b16 %v945
    %v1027 = vunpack.c.l.b16 %v946
    %v1028 = vunpack.c.h.b16 %v946
    %v1029 = vunpack.c.l.b16 %v947
    %v1030 = vunpack.c.h.b16 %v947
    %v1031 = vunpack.c.l.b16 %v948
    %v1032 = vunpack.c.h.b16 %v948
    %v1033 = vunpack.c.l.b16 %v949
    %v1034 = vunpack.c.h.b16 %v949
    %v1035 = vunpack.c.l.b16 %v950
    %v1036 = vunpack.c.h.b16 %v950
    %v1037 = vunpack.c.l.b16 %v951
    %v1038 = vunpack.c.h.b16 %v951
    %v1039 = vunpack.c.l.b16 %v952
    %v1040 = vunpack.c.h.b16 %v952
    %v1041 = vunpack.c.l.b16 %v953
    %v1042 = vunpack.c.h.b16 %v953
    %v1043 = vunpack.c.l.b16 %v954
    %v1044 = vunpack.c.h.b16 %v954
    %v1045 = vunpack.c.l.b16 %v955
    %v1046 = vunpack.c.h.b16 %v955
    %v1047 = vunpack.c.l.b16 %v956
    %v1048 = vunpack.c.h.b16 %v956
    %v1049 = vunpack.c.l.b16 %v957
    %v1050 = vunpack.c.h.b16 %v957
    %v1051 = vunpack.c.l.b16 %v958
    %v1052 = vunpack.c.h.b16 %v958
    %v1053 = vunpack.c.l.b16 %v959
    %v1054 = vunpack.c.h.b16 %v959
    %v1055 = vunpack.c.l.b16 %v960
    %v1056 = vunpack.c.h.b16 %v960
    %v1057 = vunpack.c.l.b16 %v961
    %v1058 = vunpack.c.h.b16 %v961
    %v1059 = vunpack.c.l.b16 %v962
    %v1060 = vunpack.c.h.b16 %v962
    %v1061 = vunpack.c.l.b16 %v963
    %v1062 = vunpack.c.h.b16 %v963
    %v1063 = vunpack.c.l.b16 %v964
    %v1064 = vunpack.c.h.b16 %v964
    %v1065 = vunpack.c.l.b16 %v965
    %v1066 = vunpack.c.h.b16 %v965
    %v1067 = vunpack.c.l.b16 %v966
    %v1068 = vunpack.c.h.b16 %v966
    %v1069 = vpack.c.b16 %v1007, %v1005
    %v1070 = vpack.c.b16 %v1008, %v1006
    %v1071 = vpack.c.b16 %v1011, %v1009
    %v1072 = vpack.c.b16 %v1012, %v1010
    %v1073 = vpack.c.b16 %v1015, %v1013
    %v1074 = vpack.c.b16 %v1016, %v1014
    %v1075 = vpack.c.b16 %v1019, %v1017
    %v1076 = vpack.c.b16 %v1020, %v1018
    %v1077 = vpack.c.b16 %v1023, %v1021
    %v1078 = vpack.c.b16 %v1024, %v1022
    %v1079 = vpack.c.b16 %v1027, %v1025
    %v1080 = vpack.c.b16 %v1028, %v1026
    %v1081 = vpack.c.b16 %v1031, %v1029
    %v1082 = vpack.c.b16 %v1032, %v1030
    %v1083 = vpack.c.b16 %v1035, %v1033
    %v1084 = vpack.c.b16 %v1036, %v1034
    %v1085 = vpack.c.b16 %v1039, %v1037
    %v1086 = vpack.c.b16 %v1040, %v1038
    %v1087 = vpack.c.b16 %v1043, %v1041
    %v1088 = vpack.c.b16 %v1044, %v1042
    %v1089 = vpack.c.b16 %v1047, %v1045
    %v1090 = vpack.c.b16 %v1048, %v1046
    %v1091 = vpack.c.b16 %v1051, %v1049
    %v1092 = vpack.c.b16 %v1052, %v1050
    %v1093 = vpack.c.b16 %v1055, %v1053
    %v1094 = vpack.c.b16 %v1056, %v1054
    %v1095 = vpack.c.b16 %v1059, %v1057
    %v1096 = vpack.c.b16 %v1060, %v1058
    %v1097 = vpack.c.b16 %v1063, %v1061
    %v1098 = vpack.c.b16 %v1064, %v1062
    %v1099 = vpack.c.b16 %v1067, %v1065
    %v1100 = vpack.c.b16 %v1068, %v1066
    %1133 = vmatpush.bf16.msra.mxu0 %v1083
    %1134 = vmatpush.bf16.msra.mxu0 %v1081
    %1135 = vmatpush.bf16.msra.mxu0 %v1079
    %1136 = vmatpush.bf16.msra.mxu0 %v1077
    %1137 = vmatpush.bf16.msra.mxu0 %v1075
    %1138 = vmatpush.bf16.msra.mxu0 %v1073
    %1139 = vmatpush.bf16.msra.mxu0 %v1071
    %1140 = vmatpush.bf16.msra.mxu0 %v1069
    %1141 = vmatmul.bf16.gmra.mxu0 %v933
    %v1142 = vpop.f32.mrf.mxu0
    %v1143 = vadd.f32 %v969, %v1142
    %v1144 = vpop.f32.mrf.mxu0
    %1145 = vdwg.mxu0
    %1146 = vmatpush.bf16.msra.mxu0 %v1099
    %1147 = vmatpush.bf16.msra.mxu0 %v1097
    %1148 = vmatpush.bf16.msra.mxu0 %v1095
    %1149 = vmatpush.bf16.msra.mxu0 %v1093
    %1150 = vmatpush.bf16.msra.mxu0 %v1091
    %1151 = vmatpush.bf16.msra.mxu0 %v1089
    %1152 = vmatpush.bf16.msra.mxu0 %v1087
    %1153 = vmatpush.bf16.msra.mxu0 %v1085
    %1154 = vmatmul.bf16.gmra.mxu0 %v934
    %v1155 = vpop.f32.mrf.mxu0
    %v1156 = vadd.f32 %v1143, %v1155
    %v1157 = vpop.f32.mrf.mxu0
    %1158 = vdwg.mxu0
    %1159 = vmatpush.bf16.msra.mxu0 %v1084
    %1160 = vmatpush.bf16.msra.mxu0 %v1082
    %1161 = vmatpush.bf16.msra.mxu0 %v1080
    %1162 = vmatpush.bf16.msra.mxu0 %v1078
    %1163 = vmatpush.bf16.msra.mxu0 %v1076
    %1164 = vmatpush.bf16.msra.mxu0 %v1074
    %1165 = vmatpush.bf16.msra.mxu0 %v1072
    %1166 = vmatpush.bf16.msra.mxu0 %v1070
    %1167 = vmatmul.bf16.gmra.mxu0 %v933
    %v1168 = vpop.f32.mrf.mxu0
    %v1169 = vadd.f32 %v970, %v1168
    %v1170 = vpop.f32.mrf.mxu0
    %1171 = vdwg.mxu0
    %1172 = vmatpush.bf16.msra.mxu0 %v1100
    %1173 = vmatpush.bf16.msra.mxu0 %v1098
    %1174 = vmatpush.bf16.msra.mxu0 %v1096
    %1175 = vmatpush.bf16.msra.mxu0 %v1094
    %1176 = vmatpush.bf16.msra.mxu0 %v1092
    %1177 = vmatpush.bf16.msra.mxu0 %v1090
    %1178 = vmatpush.bf16.msra.mxu0 %v1088
    %1179 = vmatpush.bf16.msra.mxu0 %v1086
    %1180 = vmatmul.bf16.gmra.mxu0 %v934
    %v1181 = vpop.f32.mrf.mxu0
    %v1182 = vadd.f32 %v1169, %v1181
    %v1183 = vpop.f32.mrf.mxu0
    %1184 = vdwg.mxu0
    %v1185 = vmax.f32 %v1156, 0.0
    %v1186 = vmax.f32 %v1182, 0.0
    %v1187 = vpack.c.bf16 %v1185, %v1185
    %v1188 = vpack.c.bf16 %v1186, %v1186
    %v1189 = vld [vmem:[#allocation13] sm:$0xf]
    %v1190 = vld [vmem:[#allocation13 + $0x4] sm:$0xf]
    %v1191 = vld [vmem:[#allocation13 + $0x8] sm:$0xf]
    %v1192 = vld [vmem:[#allocation13 + $0xc] sm:$0xf]
    %v1193 = vld [vmem:[#allocation13 + $0x10] sm:$0xf]
    %v1194 = vld [vmem:[#allocation13 + $0x14] sm:$0xf]
    %v1195 = vld [vmem:[#allocation13 + $0x18] sm:$0xf]
    %v1196 = vld [vmem:[#allocation13 + $0x1c] sm:$0xf]
    %v1197 = vld [vmem:[#allocation13 + $0x20] sm:$0xf]
    %v1198 = vld [vmem:[#allocation13 + $0x24] sm:$0xf]
    %v1199 = vld [vmem:[#allocation13 + $0x28] sm:$0xf]
    %v1200 = vld [vmem:[#allocation13 + $0x2c] sm:$0xf]
    %v1201 = vld [vmem:[#allocation13 + $0x30] sm:$0xf]
    %v1202 = vld [vmem:[#allocation13 + $0x34] sm:$0xf]
    %v1203 = vld [vmem:[#allocation13 + $0x38] sm:$0xf]
    %v1204 = vld [vmem:[#allocation13 + $0x3c] sm:$0xf]
    %v1205 = vld [vmem:[#allocation13 + $0x40] sm:$0xf]
    %v1206 = vld [vmem:[#allocation13 + $0x44] sm:$0xf]
    %v1207 = vld [vmem:[#allocation13 + $0x48] sm:$0xf]
    %v1208 = vld [vmem:[#allocation13 + $0x4c] sm:$0xf]
    %v1209 = vld [vmem:[#allocation13 + $0x50] sm:$0xf]
    %v1210 = vld [vmem:[#allocation13 + $0x54] sm:$0xf]
    %v1211 = vld [vmem:[#allocation13 + $0x58] sm:$0xf]
    %v1212 = vld [vmem:[#allocation13 + $0x5c] sm:$0xf]
    %v1213 = vld [vmem:[#allocation13 + $0x60] sm:$0xf]
    %v1214 = vld [vmem:[#allocation13 + $0x64] sm:$0xf]
    %v1215 = vld [vmem:[#allocation13 + $0x68] sm:$0xf]
    %v1216 = vld [vmem:[#allocation13 + $0x6c] sm:$0xf]
    %v1217 = vld [vmem:[#allocation13 + $0x70] sm:$0xf]
    %v1218 = vld [vmem:[#allocation13 + $0x74] sm:$0xf]
    %v1219 = vld [vmem:[#allocation13 + $0x78] sm:$0xf]
    %v1220 = vld [vmem:[#allocation13 + $0x7c] sm:$0xf]
    %v1221 = vld [vmem:[%s8] sm:$0x1]
    %v1223 = vperm.slane %v1221, 0
    %v1257 = vunpack.c.l.b16 %v1189
    %v1258 = vunpack.c.l.b16 %v1190
    %v1259 = vunpack.c.l.b16 %v1191
    %v1260 = vunpack.c.l.b16 %v1192
    %v1261 = vunpack.c.l.b16 %v1193
    %v1262 = vunpack.c.l.b16 %v1194
    %v1263 = vunpack.c.l.b16 %v1195
    %v1264 = vunpack.c.l.b16 %v1196
    %v1265 = vunpack.c.l.b16 %v1197
    %v1266 = vunpack.c.l.b16 %v1198
    %v1267 = vunpack.c.l.b16 %v1199
    %v1268 = vunpack.c.l.b16 %v1200
    %v1269 = vunpack.c.l.b16 %v1201
    %v1270 = vunpack.c.l.b16 %v1202
    %v1271 = vunpack.c.l.b16 %v1203
    %v1272 = vunpack.c.l.b16 %v1204
    %v1273 = vunpack.c.l.b16 %v1205
    %v1274 = vunpack.c.l.b16 %v1206
    %v1275 = vunpack.c.l.b16 %v1207
    %v1276 = vunpack.c.l.b16 %v1208
    %v1277 = vunpack.c.l.b16 %v1209
    %v1278 = vunpack.c.l.b16 %v1210
    %v1279 = vunpack.c.l.b16 %v1211
    %v1280 = vunpack.c.l.b16 %v1212
    %v1281 = vunpack.c.l.b16 %v1213
    %v1282 = vunpack.c.l.b16 %v1214
    %v1283 = vunpack.c.l.b16 %v1215
    %v1284 = vunpack.c.l.b16 %v1216
    %v1285 = vunpack.c.l.b16 %v1217
    %v1286 = vunpack.c.l.b16 %v1218
    %v1287 = vunpack.c.l.b16 %v1219
    %v1288 = vunpack.c.l.b16 %v1220
    %v1289 = vpack.c.b16 %v1258, %v1257
    %v1290 = vpack.c.b16 %v1260, %v1259
    %v1291 = vpack.c.b16 %v1262, %v1261
    %v1292 = vpack.c.b16 %v1264, %v1263
    %v1293 = vpack.c.b16 %v1266, %v1265
    %v1294 = vpack.c.b16 %v1268, %v1267
    %v1295 = vpack.c.b16 %v1270, %v1269
    %v1296 = vpack.c.b16 %v1272, %v1271
    %v1297 = vpack.c.b16 %v1274, %v1273
    %v1298 = vpack.c.b16 %v1276, %v1275
    %v1299 = vpack.c.b16 %v1278, %v1277
    %v1300 = vpack.c.b16 %v1280, %v1279
    %v1301 = vpack.c.b16 %v1282, %v1281
    %v1302 = vpack.c.b16 %v1284, %v1283
    %v1303 = vpack.c.b16 %v1286, %v1285
    %v1304 = vpack.c.b16 %v1288, %v1287
    %1321 = vmatpush.bf16.msra.mxu0 %v1296
    %1322 = vmatpush.bf16.msra.mxu0 %v1295
    %1323 = vmatpush.bf16.msra.mxu0 %v1294
    %1324 = vmatpush.bf16.msra.mxu0 %v1293
    %1325 = vmatpush.bf16.msra.mxu0 %v1292
    %1326 = vmatpush.bf16.msra.mxu0 %v1291
    %1327 = vmatpush.bf16.msra.mxu0 %v1290
    %1328 = vmatpush.bf16.msra.mxu0 %v1289
    %1329 = vmatmul.bf16.gmra.mxu0 %v1187
    %v1330 = vpop.f32.mrf.mxu0
    %v1331 = vadd.f32 %v1223, %v1330
    %v1332 = vpop.f32.mrf.mxu0
    %1333 = vdwg.mxu0
    %1334 = vmatpush.bf16.msra.mxu0 %v1304
    %1335 = vmatpush.bf16.msra.mxu0 %v1303
    %1336 = vmatpush.bf16.msra.mxu0 %v1302
    %1337 = vmatpush.bf16.msra.mxu0 %v1301
    %1338 = vmatpush.bf16.msra.mxu0 %v1300
    %1339 = vmatpush.bf16.msra.mxu0 %v1299
    %1340 = vmatpush.bf16.msra.mxu0 %v1298
    %1341 = vmatpush.bf16.msra.mxu0 %v1297
    %1342 = vmatmul.bf16.gmra.mxu0 %v1188
    %v1343 = vpop.f32.mrf.mxu0
    %v1344 = vadd.f32 %v1331, %v1343
    %v1345 = vpop.f32.mrf.mxu0
    %1346 = vdwg.mxu0
    %v1347 = vtanh.pop %v1344
    %v1348 = vadd.f32 %v803, %v1347
    %1349 = vst [vmem:[#allocation3] sm:$0xff] %v1348
    %v1350 = vld [vmem:[#allocation3] sm:$0xff]
    %v1351 = vpack.c.bf16 %v1350, %v1350
    %v1352 = vld [vmem:[#allocation2] sm:$0xff]
    %v1353 = vld [vmem:[#allocation2 + $0x8] sm:$0xff]
    %v1354 = vld [vmem:[#allocation10] sm:$0xff]
    %v1355 = vld [vmem:[#allocation10 + $0x8] sm:$0xff]
    %v1356 = vld [vmem:[#allocation10 + $0x10] sm:$0xff]
    %v1357 = vld [vmem:[#allocation10 + $0x18] sm:$0xff]
    %v1358 = vld [vmem:[#allocation10 + $0x20] sm:$0xff]
    %v1359 = vld [vmem:[#allocation10 + $0x28] sm:$0xff]
    %v1360 = vld [vmem:[#allocation10 + $0x30] sm:$0xff]
    %v1361 = vld [vmem:[#allocation10 + $0x38] sm:$0xff]
    %v1362 = vld [vmem:[#allocation10 + $0x40] sm:$0xff]
    %v1363 = vld [vmem:[#allocation10 + $0x48] sm:$0xff]
    %v1364 = vld [vmem:[#allocation10 + $0x50] sm:$0xff]
    %v1365 = vld [vmem:[#allocation10 + $0x58] sm:$0xff]
    %v1366 = vld [vmem:[#allocation10 + $0x60] sm:$0xff]
    %v1367 = vld [vmem:[#allocation10 + $0x68] sm:$0xff]
    %v1368 = vld [vmem:[#allocation10 + $0x70] sm:$0xff]
    %v1369 = vld [vmem:[#allocation10 + $0x78] sm:$0xff]
    %v1386 = vunpack.c.l.b16 %v1354
    %v1387 = vunpack.c.h.b16 %v1354
    %v1388 = vunpack.c.l.b16 %v1355
    %v1389 = vunpack.c.h.b16 %v1355
    %v1390 = vunpack.c.l.b16 %v1356
    %v1391 = vunpack.c.h.b16 %v1356
    %v1392 = vunpack.c.l.b16 %v1357
    %v1393 = vunpack.c.h.b16 %v1357
    %v1394 = vunpack.c.l.b16 %v1358
    %v1395 = vunpack.c.h.b16 %v1358
    %v1396 = vunpack.c.l.b16 %v1359
    %v1397 = vunpack.c.h.b16 %v1359
    %v1398 = vunpack.c.l.b16 %v1360
    %v1399 = vunpack.c.h.b16 %v1360
    %v1400 = vunpack.c.l.b16 %v1361
    %v1401 = vunpack.c.h.b16 %v1361
    %v1402 = vunpack.c.l.b16 %v1362
    %v1403 = vunpack.c.h.b16 %v1362
    %v1404 = vunpack.c.l.b16 %v1363
    %v1405 = vunpack.c.h.b16 %v1363
    %v1406 = vunpack.c.l.b16 %v1364
    %v1407 = vunpack.c.h.b16 %v1364
    %v1408 = vunpack.c.l.b16 %v1365
    %v1409 = vunpack.c.h.b16 %v1365
    %v1410 = vunpack.c.l.b16 %v1366
    %v1411 = vunpack.c.h.b16 %v1366
    %v1412 = vunpack.c.l.b16 %v1367
    %v1413 = vunpack.c.h.b16 %v1367
    %v1414 = vunpack.c.l.b16 %v1368
    %v1415 = vunpack.c.h.b16 %v1368
    %v1416 = vunpack.c.l.b16 %v1369
    %v1417 = vunpack.c.h.b16 %v1369
    %v1418 = vpack.c.b16 %v1388, %v1386
    %v1419 = vpack.c.b16 %v1389, %v1387
    %v1420 = vpack.c.b16 %v1392, %v1390
    %v1421 = vpack.c.b16 %v1393, %v1391
    %v1422 = vpack.c.b16 %v1396, %v1394
    %v1423 = vpack.c.b16 %v1397, %v1395
    %v1424 = vpack.c.b16 %v1400, %v1398
    %v1425 = vpack.c.b16 %v1401, %v1399
    %v1426 = vpack.c.b16 %v1404, %v1402
    %v1427 = vpack.c.b16 %v1405, %v1403
    %v1428 = vpack.c.b16 %v1408, %v1406
    %v1429 = vpack.c.b16 %v1409, %v1407
    %v1430 = vpack.c.b16 %v1412, %v1410
    %v1431 = vpack.c.b16 %v1413, %v1411
    %v1432 = vpack.c.b16 %v1416, %v1414
    %v1433 = vpack.c.b16 %v1417, %v1415
    %1450 = vmatpush.bf16.msra.mxu0 %v1432
    %1451 = vmatpush.bf16.msra.mxu0 %v1430
    %1452 = vmatpush.bf16.msra.mxu0 %v1428
    %1453 = vmatpush.bf16.msra.mxu0 %v1426
    %1454 = vmatpush.bf16.msra.mxu0 %v1424
    %1455 = vmatpush.bf16.msra.mxu0 %v1422
    %1456 = vmatpush.bf16.msra.mxu0 %v1420
    %1457 = vmatpush.bf16.msra.mxu0 %v1418
    %1458 = vmatmul.bf16.gmra.mxu0 %v1351
    %v1459 = vpop.f32.mrf.mxu0
    %v1460 = vadd.f32 0.0, %v1459
    %v1461 = vpop.f32.mrf.mxu0
    %1462 = vdwg.mxu0
    %1463 = vmatpush.bf16.msra.mxu0 %v1433
    %1464 = vmatpush.bf16.msra.mxu0 %v1431
    %1465 = vmatpush.bf16.msra.mxu0 %v1429
    %1466 = vmatpush.bf16.msra.mxu0 %v1427
    %1467 = vmatpush.bf16.msra.mxu0 %v1425
    %1468 = vmatpush.bf16.msra.mxu0 %v1423
    %1469 = vmatpush.bf16.msra.mxu0 %v1421
    %1470 = vmatpush.bf16.msra.mxu0 %v1419
    %1471 = vmatmul.bf16.gmra.mxu0 %v1351
    %v1472 = vpop.f32.mrf.mxu0
    %v1473 = vadd.f32 0.0, %v1472
    %v1474 = vpop.f32.mrf.mxu0
    %1475 = vdwg.mxu0
    %v1476 = vadd.f32 %v1352, %v1460
    %v1477 = vadd.f32 %v1353, %v1473
    %v1478 = vmax.f32 %v1476, 0.0
    %v1479 = vmax.f32 %v1477, 0.0
    %v1480 = vpack.c.bf16 %v1478, %v1478
    %v1481 = vpack.c.bf16 %v1479, %v1479
    %v1482 = vld [vmem:[#allocation12] sm:$0xff]
    %v1483 = vld [vmem:[#allocation12 + $0x8] sm:$0xff]
    %v1484 = vld [vmem:[#allocation12 + $0x10] sm:$0xff]
    %v1485 = vld [vmem:[#allocation12 + $0x18] sm:$0xff]
    %v1486 = vld [vmem:[#allocation12 + $0x20] sm:$0xff]
    %v1487 = vld [vmem:[#allocation12 + $0x28] sm:$0xff]
    %v1488 = vld [vmem:[#allocation12 + $0x30] sm:$0xff]
    %v1489 = vld [vmem:[#allocation12 + $0x38] sm:$0xff]
    %v1490 = vld [vmem:[#allocation12 + $0x40] sm:$0xff]
    %v1491 = vld [vmem:[#allocation12 + $0x48] sm:$0xff]
    %v1492 = vld [vmem:[#allocation12 + $0x50] sm:$0xff]
    %v1493 = vld [vmem:[#allocation12 + $0x58] sm:$0xff]
    %v1494 = vld [vmem:[#allocation12 + $0x60] sm:$0xff]
    %v1495 = vld [vmem:[#allocation12 + $0x68] sm:$0xff]
    %v1496 = vld [vmem:[#allocation12 + $0x70] sm:$0xff]
    %v1497 = vld [vmem:[#allocation12 + $0x78] sm:$0xff]
    %v1498 = vld [vmem:[#allocation12 + $0x80] sm:$0xff]
    %v1499 = vld [vmem:[#allocation12 + $0x88] sm:$0xff]
    %v1500 = vld [vmem:[#allocation12 + $0x90] sm:$0xff]
    %v1501 = vld [vmem:[#allocation12 + $0x98] sm:$0xff]
    %v1502 = vld [vmem:[#allocation12 + $0xa0] sm:$0xff]
    %v1503 = vld [vmem:[#allocation12 + $0xa8] sm:$0xff]
    %v1504 = vld [vmem:[#allocation12 + $0xb0] sm:$0xff]
    %v1505 = vld [vmem:[#allocation12 + $0xb8] sm:$0xff]
    %v1506 = vld [vmem:[#allocation12 + $0xc0] sm:$0xff]
    %v1507 = vld [vmem:[#allocation12 + $0xc8] sm:$0xff]
    %v1508 = vld [vmem:[#allocation12 + $0xd0] sm:$0xff]
    %v1509 = vld [vmem:[#allocation12 + $0xd8] sm:$0xff]
    %v1510 = vld [vmem:[#allocation12 + $0xe0] sm:$0xff]
    %v1511 = vld [vmem:[#allocation12 + $0xe8] sm:$0xff]
    %v1512 = vld [vmem:[#allocation12 + $0xf0] sm:$0xff]
    %v1513 = vld [vmem:[#allocation12 + $0xf8] sm:$0xff]
    %v1514 = vld [vmem:[%s6] sm:$0x3]
    %v1516 = vperm.slane %v1514, 0
    %v1517 = vperm.slane %v1514, 1
    %v1552 = vunpack.c.l.b16 %v1482
    %v1553 = vunpack.c.h.b16 %v1482
    %v1554 = vunpack.c.l.b16 %v1483
    %v1555 = vunpack.c.h.b16 %v1483
    %v1556 = vunpack.c.l.b16 %v1484
    %v1557 = vunpack.c.h.b16 %v1484
    %v1558 = vunpack.c.l.b16 %v1485
    %v1559 = vunpack.c.h.b16 %v1485
    %v1560 = vunpack.c.l.b16 %v1486
    %v1561 = vunpack.c.h.b16 %v1486
    %v1562 = vunpack.c.l.b16 %v1487
    %v1563 = vunpack.c.h.b16 %v1487
    %v1564 = vunpack.c.l.b16 %v1488
    %v1565 = vunpack.c.h.b16 %v1488
    %v1566 = vunpack.c.l.b16 %v1489
    %v1567 = vunpack.c.h.b16 %v1489
    %v1568 = vunpack.c.l.b16 %v1490
    %v1569 = vunpack.c.h.b16 %v1490
    %v1570 = vunpack.c.l.b16 %v1491
    %v1571 = vunpack.c.h.b16 %v1491
    %v1572 = vunpack.c.l.b16 %v1492
    %v1573 = vunpack.c.h.b16 %v1492
    %v1574 = vunpack.c.l.b16 %v1493
    %v1575 = vunpack.c.h.b16 %v1493
    %v1576 = vunpack.c.l.b16 %v1494
    %v1577 = vunpack.c.h.b16 %v1494
    %v1578 = vunpack.c.l.b16 %v1495
    %v1579 = vunpack.c.h.b16 %v1495
    %v1580 = vunpack.c.l.b16 %v1496
    %v1581 = vunpack.c.h.b16 %v1496
    %v1582 = vunpack.c.l.b16 %v1497
    %v1583 = vunpack.c.h.b16 %v1497
    %v1584 = vunpack.c.l.b16 %v1498
    %v1585 = vunpack.c.h.b16 %v1498
    %v1586 = vunpack.c.l.b16 %v1499
    %v1587 = vunpack.c.h.b16 %v1499
    %v1588 = vunpack.c.l.b16 %v1500
    %v1589 = vunpack.c.h.b16 %v1500
    %v1590 = vunpack.c.l.b16 %v1501
    %v1591 = vunpack.c.h.b16 %v1501
    %v1592 = vunpack.c.l.b16 %v1502
    %v1593 = vunpack.c.h.b16 %v1502
    %v1594 = vunpack.c.l.b16 %v1503
    %v1595 = vunpack.c.h.b16 %v1503
    %v1596 = vunpack.c.l.b16 %v1504
    %v1597 = vunpack.c.h.b16 %v1504
    %v1598 = vunpack.c.l.b16 %v1505
    %v1599 = vunpack.c.h.b16 %v1505
    %v1600 = vunpack.c.l.b16 %v1506
    %v1601 = vunpack.c.h.b16 %v1506
    %v1602 = vunpack.c.l.b16 %v1507
    %v1603 = vunpack.c.h.b16 %v1507
    %v1604 = vunpack.c.l.b16 %v1508
    %v1605 = vunpack.c.h.b16 %v1508
    %v1606 = vunpack.c.l.b16 %v1509
    %v1607 = vunpack.c.h.b16 %v1509
    %v1608 = vunpack.c.l.b16 %v1510
    %v1609 = vunpack.c.h.b16 %v1510
    %v1610 = vunpack.c.l.b16 %v1511
    %v1611 = vunpack.c.h.b16 %v1511
    %v1612 = vunpack.c.l.b16 %v1512
    %v1613 = vunpack.c.h.b16 %v1512
    %v1614 = vunpack.c.l.b16 %v1513
    %v1615 = vunpack.c.h.b16 %v1513
    %v1616 = vpack.c.b16 %v1554, %v1552
    %v1617 = vpack.c.b16 %v1555, %v1553
    %v1618 = vpack.c.b16 %v1558, %v1556
    %v1619 = vpack.c.b16 %v1559, %v1557
    %v1620 = vpack.c.b16 %v1562, %v1560
    %v1621 = vpack.c.b16 %v1563, %v1561
    %v1622 = vpack.c.b16 %v1566, %v1564
    %v1623 = vpack.c.b16 %v1567, %v1565
    %v1624 = vpack.c.b16 %v1570, %v1568
    %v1625 = vpack.c.b16 %v1571, %v1569
    %v1626 = vpack.c.b16 %v1574, %v1572
    %v1627 = vpack.c.b16 %v1575, %v1573
    %v1628 = vpack.c.b16 %v1578, %v1576
    %v1629 = vpack.c.b16 %v1579, %v1577
    %v1630 = vpack.c.b16 %v1582, %v1580
    %v1631 = vpack.c.b16 %v1583, %v1581
    %v1632 = vpack.c.b16 %v1586, %v1584
    %v1633 = vpack.c.b16 %v1587, %v1585
    %v1634 = vpack.c.b16 %v1590, %v1588
    %v1635 = vpack.c.b16 %v1591, %v1589
    %v1636 = vpack.c.b16 %v1594, %v1592
    %v1637 = vpack.c.b16 %v1595, %v1593
    %v1638 = vpack.c.b16 %v1598, %v1596
    %v1639 = vpack.c.b16 %v1599, %v1597
    %v1640 = vpack.c.b16 %v1602, %v1600
    %v1641 = vpack.c.b16 %v1603, %v1601
    %v1642 = vpack.c.b16 %v1606, %v1604
    %v1643 = vpack.c.b16 %v1607, %v1605
    %v1644 = vpack.c.b16 %v1610, %v1608
    %v1645 = vpack.c.b16 %v1611, %v1609
    %v1646 = vpack.c.b16 %v1614, %v1612
    %v1647 = vpack.c.b16 %v1615, %v1613
    %1680 = vmatpush.bf16.msra.mxu0 %v1630
    %1681 = vmatpush.bf16.msra.mxu0 %v1628
    %1682 = vmatpush.bf16.msra.mxu0 %v1626
    %1683 = vmatpush.bf16.msra.mxu0 %v1624
    %1684 = vmatpush.bf16.msra.mxu0 %v1622
    %1685 = vmatpush.bf16.msra.mxu0 %v1620
    %1686 = vmatpush.bf16.msra.mxu0 %v1618
    %1687 = vmatpush.bf16.msra.mxu0 %v1616
    %1688 = vmatmul.bf16.gmra.mxu0 %v1480
    %v1689 = vpop.f32.mrf.mxu0
    %v1690 = vadd.f32 %v1516, %v1689
    %v1691 = vpop.f32.mrf.mxu0
    %1692 = vdwg.mxu0
    %1693 = vmatpush.bf16.msra.mxu0 %v1646
    %1694 = vmatpush.bf16.msra.mxu0 %v1644
    %1695 = vmatpush.bf16.msra.mxu0 %v1642
    %1696 = vmatpush.bf16.msra.mxu0 %v1640
    %1697 = vmatpush.bf16.msra.mxu0 %v1638
    %1698 = vmatpush.bf16.msra.mxu0 %v1636
    %1699 = vmatpush.bf16.msra.mxu0 %v1634
    %1700 = vmatpush.bf16.msra.mxu0 %v1632
    %1701 = vmatmul.bf16.gmra.mxu0 %v1481
    %v1702 = vpop.f32.mrf.mxu0
    %v1703 = vadd.f32 %v1690, %v1702
    %v1704 = vpop.f32.mrf.mxu0
    %1705 = vdwg.mxu0
    %1706 = vmatpush.bf16.msra.mxu0 %v1631
    %1707 = vmatpush.bf16.msra.mxu0 %v1629
    %1708 = vmatpush.bf16.msra.mxu0 %v1627
    %1709 = vmatpush.bf16.msra.mxu0 %v1625
    %1710 = vmatpush.bf16.msra.mxu0 %v1623
    %1711 = vmatpush.bf16.msra.mxu0 %v1621
    %1712 = vmatpush.bf16.msra.mxu0 %v1619
    %1713 = vmatpush.bf16.msra.mxu0 %v1617
    %1714 = vmatmul.bf16.gmra.mxu0 %v1480
    %v1715 = vpop.f32.mrf.mxu0
    %v1716 = vadd.f32 %v1517, %v1715
    %v1717 = vpop.f32.mrf.mxu0
    %1718 = vdwg.mxu0
    %1719 = vmatpush.bf16.msra.mxu0 %v1647
    %1720 = vmatpush.bf16.msra.mxu0 %v1645
    %1721 = vmatpush.bf16.msra.mxu0 %v1643
    %1722 = vmatpush.bf16.msra.mxu0 %v1641
    %1723 = vmatpush.bf16.msra.mxu0 %v1639
    %1724 = vmatpush.bf16.msra.mxu0 %v1637
    %1725 = vmatpush.bf16.msra.mxu0 %v1635
    %1726 = vmatpush.bf16.msra.mxu0 %v1633
    %1727 = vmatmul.bf16.gmra.mxu0 %v1481
    %v1728 = vpop.f32.mrf.mxu0
    %v1729 = vadd.f32 %v1716, %v1728
    %v1730 = vpop.f32.mrf.mxu0
    %1731 = vdwg.mxu0
    %v1732 = vmax.f32 %v1703, 0.0
    %v1733 = vmax.f32 %v1729, 0.0
    %v1734 = vpack.c.bf16 %v1732, %v1732
    %v1735 = vpack.c.bf16 %v1733, %v1733
    %v1736 = vld [vmem:[#allocation13] sm:$0xf]
    %v1737 = vld [vmem:[#allocation13 + $0x4] sm:$0xf]
    %v1738 = vld [vmem:[#allocation13 + $0x8] sm:$0xf]
    %v1739 = vld [vmem:[#allocation13 + $0xc] sm:$0xf]
    %v1740 = vld [vmem:[#allocation13 + $0x10] sm:$0xf]
    %v1741 = vld [vmem:[#allocation13 + $0x14] sm:$0xf]
    %v1742 = vld [vmem:[#allocation13 + $0x18] sm:$0xf]
    %v1743 = vld [vmem:[#allocation13 + $0x1c] sm:$0xf]
    %v1744 = vld [vmem:[#allocation13 + $0x20] sm:$0xf]
    %v1745 = vld [vmem:[#allocation13 + $0x24] sm:$0xf]
    %v1746 = vld [vmem:[#allocation13 + $0x28] sm:$0xf]
    %v1747 = vld [vmem:[#allocation13 + $0x2c] sm:$0xf]
    %v1748 = vld [vmem:[#allocation13 + $0x30] sm:$0xf]
    %v1749 = vld [vmem:[#allocation13 + $0x34] sm:$0xf]
    %v1750 = vld [vmem:[#allocation13 + $0x38] sm:$0xf]
    %v1751 = vld [vmem:[#allocation13 + $0x3c] sm:$0xf]
    %v1752 = vld [vmem:[#allocation13 + $0x40] sm:$0xf]
    %v1753 = vld [vmem:[#allocation13 + $0x44] sm:$0xf]
    %v1754 = vld [vmem:[#allocation13 + $0x48] sm:$0xf]
    %v1755 = vld [vmem:[#allocation13 + $0x4c] sm:$0xf]
    %v1756 = vld [vmem:[#allocation13 + $0x50] sm:$0xf]
    %v1757 = vld [vmem:[#allocation13 + $0x54] sm:$0xf]
    %v1758 = vld [vmem:[#allocation13 + $0x58] sm:$0xf]
    %v1759 = vld [vmem:[#allocation13 + $0x5c] sm:$0xf]
    %v1760 = vld [vmem:[#allocation13 + $0x60] sm:$0xf]
    %v1761 = vld [vmem:[#allocation13 + $0x64] sm:$0xf]
    %v1762 = vld [vmem:[#allocation13 + $0x68] sm:$0xf]
    %v1763 = vld [vmem:[#allocation13 + $0x6c] sm:$0xf]
    %v1764 = vld [vmem:[#allocation13 + $0x70] sm:$0xf]
    %v1765 = vld [vmem:[#allocation13 + $0x74] sm:$0xf]
    %v1766 = vld [vmem:[#allocation13 + $0x78] sm:$0xf]
    %v1767 = vld [vmem:[#allocation13 + $0x7c] sm:$0xf]
    %v1768 = vld [vmem:[%s8] sm:$0x1]
    %v1770 = vperm.slane %v1768, 0
    %v1804 = vunpack.c.l.b16 %v1736
    %v1805 = vunpack.c.l.b16 %v1737
    %v1806 = vunpack.c.l.b16 %v1738
    %v1807 = vunpack.c.l.b16 %v1739
    %v1808 = vunpack.c.l.b16 %v1740
    %v1809 = vunpack.c.l.b16 %v1741
    %v1810 = vunpack.c.l.b16 %v1742
    %v1811 = vunpack.c.l.b16 %v1743
    %v1812 = vunpack.c.l.b16 %v1744
    %v1813 = vunpack.c.l.b16 %v1745
    %v1814 = vunpack.c.l.b16 %v1746
    %v1815 = vunpack.c.l.b16 %v1747
    %v1816 = vunpack.c.l.b16 %v1748
    %v1817 = vunpack.c.l.b16 %v1749
    %v1818 = vunpack.c.l.b16 %v1750
    %v1819 = vunpack.c.l.b16 %v1751
    %v1820 = vunpack.c.l.b16 %v1752
    %v1821 = vunpack.c.l.b16 %v1753
    %v1822 = vunpack.c.l.b16 %v1754
    %v1823 = vunpack.c.l.b16 %v1755
    %v1824 = vunpack.c.l.b16 %v1756
    %v1825 = vunpack.c.l.b16 %v1757
    %v1826 = vunpack.c.l.b16 %v1758
    %v1827 = vunpack.c.l.b16 %v1759
    %v1828 = vunpack.c.l.b16 %v1760
    %v1829 = vunpack.c.l.b16 %v1761
    %v1830 = vunpack.c.l.b16 %v1762
    %v1831 = vunpack.c.l.b16 %v1763
    %v1832 = vunpack.c.l.b16 %v1764
    %v1833 = vunpack.c.l.b16 %v1765
    %v1834 = vunpack.c.l.b16 %v1766
    %v1835 = vunpack.c.l.b16 %v1767
    %v1836 = vpack.c.b16 %v1805, %v1804
    %v1837 = vpack.c.b16 %v1807, %v1806
    %v1838 = vpack.c.b16 %v1809, %v1808
    %v1839 = vpack.c.b16 %v1811, %v1810
    %v1840 = vpack.c.b16 %v1813, %v1812
    %v1841 = vpack.c.b16 %v1815, %v1814
    %v1842 = vpack.c.b16 %v1817, %v1816
    %v1843 = vpack.c.b16 %v1819, %v1818
    %v1844 = vpack.c.b16 %v1821, %v1820
    %v1845 = vpack.c.b16 %v1823, %v1822
    %v1846 = vpack.c.b16 %v1825, %v1824
    %v1847 = vpack.c.b16 %v1827, %v1826
    %v1848 = vpack.c.b16 %v1829, %v1828
    %v1849 = vpack.c.b16 %v1831, %v1830
    %v1850 = vpack.c.b16 %v1833, %v1832
    %v1851 = vpack.c.b16 %v1835, %v1834
    %1868 = vmatpush.bf16.msra.mxu0 %v1843
    %1869 = vmatpush.bf16.msra.mxu0 %v1842
    %1870 = vmatpush.bf16.msra.mxu0 %v1841
    %1871 = vmatpush.bf16.msra.mxu0 %v1840
    %1872 = vmatpush.bf16.msra.mxu0 %v1839
    %1873 = vmatpush.bf16.msra.mxu0 %v1838
    %1874 = vmatpush.bf16.msra.mxu0 %v1837
    %1875 = vmatpush.bf16.msra.mxu0 %v1836
    %1876 = vmatmul.bf16.gmra.mxu0 %v1734
    %v1877 = vpop.f32.mrf.mxu0
    %v1878 = vadd.f32 %v1770, %v1877
    %v1879 = vpop.f32.mrf.mxu0
    %1880 = vdwg.mxu0
    %1881 = vmatpush.bf16.msra.mxu0 %v1851
    %1882 = vmatpush.bf16.msra.mxu0 %v1850
    %1883 = vmatpush.bf16.msra.mxu0 %v1849
    %1884 = vmatpush.bf16.msra.mxu0 %v1848
    %1885 = vmatpush.bf16.msra.mxu0 %v1847
    %1886 = vmatpush.bf16.msra.mxu0 %v1846
    %1887 = vmatpush.bf16.msra.mxu0 %v1845
    %1888 = vmatpush.bf16.msra.mxu0 %v1844
    %1889 = vmatmul.bf16.gmra.mxu0 %v1735
    %v1890 = vpop.f32.mrf.mxu0
    %v1891 = vadd.f32 %v1878, %v1890
    %v1892 = vpop.f32.mrf.mxu0
    %1893 = vdwg.mxu0
    %v1894 = vtanh.pop %v1891
    %v1895 = vadd.f32 %v1350, %v1894
    %1896 = vst [vmem:[#allocation3] sm:$0xff] %v1895
    %v1897 = vld [vmem:[#allocation3] sm:$0xff]
    %1898 = vst [vmem:[#allocation15] sm:$0xff] %v1897
    // Predicated region
    $region62: #{tpu_custom_call.1} parent=1 // pred_check
      _
    $region63: #{tpu_custom_call.1} parent=1 // pred_check_branch
      %1900 = sbr.rel (0) target = $region65
    $region64: #{tpu_custom_call.1} parent=1 // pred_region
      %1902 = vsyncadd [#allocation6], 0
      %s1904 = sshll.u32 [#allocation15], 4
      %s1905 = int_to_ptr.vmem [resolvable:$true] %s1904
      %s1906 = sshll.u32 %s9, 4
      %s1907 = int_to_ptr.hbm [resolvable:$true] %s1906
      %1909 = dma.vmem_to_hbm [thread:$0]  %s1905, 128, %s1907, [#allocation6]
    $region65: #{tpu_custom_call.1} parent=1 // pred_fallthru
      _
    // Predicated region
    $region66: #{tpu_custom_call.1} parent=1 // pred_check
      _
    $region67: #{tpu_custom_call.1} parent=1 // pred_check_branch
      %1911 = sbr.rel (0) target = $region69
    $region68: #{tpu_custom_call.1} parent=1 // pred_region
      %1913 = dma.done [#allocation6], 128
    $region69: #{tpu_custom_call.1} parent=1 // pred_fallthru
      _
    %1914 = vsyncpa [#allocation5], 1
    %1915 = vsyncpa [#allocation8], 1
    %1916 = vsyncpa [#allocation11], 1
    %1917 = vsyncpa [#allocation14], 1
    %1918 = vsyncpa [#allocation6], 1

</llo_original>
